<compile_context>
chip_gen: v5e
topology: v5e:2x2
jax: 0.10.0
libtpu: 0.0.40
codegen_flags: <defaults>
</compile_context>

<pallas_src>
import numpy as np
import jax
import jax.numpy as jnp
from jax import lax
from jax.experimental import pallas as pl
from jax.experimental.pallas import tpu as pltpu


# ------------------------------ fused kernel --------------------------------

def lenet_kernel(x_ref, w1t_ref, b1_ref, w2t_ref, b2_ref,
                 sel1_ref, sel2_ref,
                 fc1w_ref, fc1b_ref, fc2w_ref, fc2b_ref,
                 fc3w_ref, fc3b_ref, fcw_ref, fcb_ref,
                 alpha_ref,
                 logit_ref, logp_ref):
    """One image per grid step. x_ref: (28, 28); outputs: (1, 2) and (1, 10)."""

    def prelu(v, k):
        a = alpha_ref[:, k:k + 1]                          # (1, 1), broadcasts
        return jnp.where(v >= 0.0, v, a * v)

    # ---- conv1 (1->6, 5x5) + PReLU: 5 MXU matmuls with banded weights ----
    # a[oh, (ow % 2)*128 + (ow // 2)*6 + co] = conv1 output at (oh, ow, co)
    a = jnp.dot(x_ref[0:24, :], w1t_ref[0], preferred_element_type=jnp.float32)
    for ki in range(1, 5):
        a = a + jnp.dot(x_ref[ki:ki + 24, :], w1t_ref[ki],
                        preferred_element_type=jnp.float32)
    a = prelu(a + b1_ref[...], 0)                          # (24, 256)

    # ---- pool1 (2x2): width = max of the two lane slabs; height = pairwise
    #      max of shifted rows + even-row selection matmul ----
    aw = jnp.maximum(a[:, 0:72], a[:, 128:200])            # (24, 72)
    ah = jnp.maximum(aw[0:23, :], aw[1:24, :])             # (23, 72)
    p1 = jnp.dot(sel1_ref[...], ah,
                 preferred_element_type=jnp.float32)       # (12, 72) lane = ow*6+ci

    # ---- conv2 (6->16, 5x5) + PReLU: 5 MXU matmuls with banded weights ----
    b = jnp.dot(p1[0:8, :], w2t_ref[0], preferred_element_type=jnp.float32)
    for ki in range(1, 5):
        b = b + jnp.dot(p1[ki:ki + 8, :], w2t_ref[ki],
                        preferred_element_type=jnp.float32)
    b = prelu(b + b2_ref[...], 1)                          # (8, 128)

    # ---- pool2 (2x2) ----
    bw = jnp.maximum(b[:, 0:64], b[:, 64:128])             # (8, 64)
    bh = jnp.maximum(bw[0:7, :], bw[1:8, :])               # (7, 64)
    p2 = jnp.dot(sel2_ref[...], bh,
                 preferred_element_type=jnp.float32)       # (4, 64) lane = ow*16+co

    # ---- fc1 (256 -> 120, padded to 128); torch NCHW flatten order folded
    #      into the 4 per-row weight blocks ----
    h = fc1b_ref[...]                                      # (1, 128)
    for r in range(4):
        h = h + jnp.dot(p2[r:r + 1, :], fc1w_ref[r],
                        preferred_element_type=jnp.float32)
    h = prelu(h, 2)

    # ---- fc2 (120 -> 84, padded 128 -> 128) ----
    h = prelu(jnp.dot(h, fc2w_ref[...], preferred_element_type=jnp.float32)
              + fc2b_ref[...], 3)

    # ---- fc3 (84 -> 2) + PReLU -> logit ----
    logit = prelu(jnp.dot(h, fc3w_ref[...], preferred_element_type=jnp.float32)
                  + fc3b_ref[...], 4)                      # (1, 2)
    logit_ref[...] = logit

    # ---- fc (2 -> 10) on the VPU (avoid a K=2 MXU round trip) + log_softmax ----
    y = (logit[:, 0:1] * fcw_ref[0:1, :]
         + logit[:, 1:2] * fcw_ref[1:2, :] + fcb_ref[...])  # (1, 10)
    m = jnp.max(y, axis=1, keepdims=True)
    lse = m + jnp.log(jnp.sum(jnp.exp(y - m), axis=1, keepdims=True))
    logp_ref[...] = y - lse


# -------------------------------- wrapper ------------------------------------

@jax.jit
def lenet_forward(x, kp):
    B = x.shape[0]

    def full_spec(arr):
        n = arr.ndim
        return pl.BlockSpec(arr.shape, lambda b: (0,) * n)

    operands = [x, kp["w1t"], kp["b1"], kp["w2t"], kp["b2"],
                kp["sel1"], kp["sel2"],
                kp["fc1w"], kp["fc1b"], kp["fc2w"], kp["fc2b"],
                kp["fc3w"], kp["fc3b"], kp["fcw"], kp["fcb"], kp["alphas"]]
    in_specs = ([pl.BlockSpec((None, None, 28, 28), lambda b: (b, 0, 0, 0))]
                + [full_spec(a) for a in operands[1:]])

    logit3, logp3 = pl.pallas_call(
        lenet_kernel,
        out_shape=(jax.ShapeDtypeStruct((B, 1, 2), jnp.float32),
                   jax.ShapeDtypeStruct((B, 1, 10), jnp.float32)),
        grid_spec=pltpu.PrefetchScalarGridSpec(
            num_scalar_prefetch=0,
            grid=(B,),
            in_specs=in_specs,
            out_specs=[pl.BlockSpec((None, 1, 2), lambda b: (b, 0, 0)),
                       pl.BlockSpec((None, 1, 10), lambda b: (b, 0, 0))]),
        compiler_params=pltpu.CompilerParams(
            dimension_semantics=("parallel",)),
    )(*operands)
    return logit3.reshape(B, 2), logp3.reshape(B, 10)


# --------------------- parameter construction / packing ----------------------

def init_torch_params(key):
    """Torch-native layouts: Conv2d (Cout,Cin,KH,KW); Linear (out,in)."""
    ks = jax.random.split(key, 12)

    def u(k, shape, fan_in):
        bound = 1.0 / np.sqrt(fan_in)
        return jax.random.uniform(k, shape, jnp.float32, -bound, bound)

    return {
        "w1": u(ks[0], (6, 1, 5, 5), 25), "b1": u(ks[1], (6,), 25),
        "w2": u(ks[2], (16, 6, 5, 5), 150), "b2": u(ks[3], (16,), 150),
        "fc1_w": u(ks[4], (120, 256), 256), "fc1_b": u(ks[5], (120,), 256),
        "fc2_w": u(ks[6], (84, 120), 120), "fc2_b": u(ks[7], (84,), 120),
        "fc3_w": u(ks[8], (2, 84), 84), "fc3_b": u(ks[9], (2,), 84),
        "fc_w": u(ks[10], (10, 2), 2), "fc_b": u(ks[11], (10,), 2),
        "alphas": jnp.full((5,), 0.25, jnp.float32),   # nn.PReLU() default init
    }


def pack_params(p):
    """Host-side packing into the layouts the fused kernel expects."""
    w1 = np.asarray(p["w1"]); b1 = np.asarray(p["b1"])
    w2 = np.asarray(p["w2"]); b2 = np.asarray(p["b2"])
    fc1_w = np.asarray(p["fc1_w"]); fc1_b = np.asarray(p["fc1_b"])
    fc2_w = np.asarray(p["fc2_w"]); fc2_b = np.asarray(p["fc2_b"])
    fc3_w = np.asarray(p["fc3_w"]); fc3_b = np.asarray(p["fc3_b"])
    fc_w = np.asarray(p["fc_w"]); fc_b = np.asarray(p["fc_b"])

    # conv1 banded weights (5, 28, 256); output lane = (ow%2)*128 + (ow//2)*6 + co
    w1t = np.zeros((5, 28, 256), np.float32)
    b1row = np.zeros((1, 256), np.float32)
    for ow in range(24):
        base = (ow % 2) * 128 + (ow // 2) * 6
        b1row[0, base:base + 6] = b1
        for ki in range(5):
            for kj in range(5):
                w1t[ki, ow + kj, base:base + 6] = w1[:, 0, ki, kj]

    # conv2 banded weights (5, 72, 128); input lane = w_in*6 + ci,
    # output lane = (ow%2)*64 + (ow//2)*16 + co
    w2t = np.zeros((5, 72, 128), np.float32)
    b2row = np.zeros((1, 128), np.float32)
    for ow in range(8):
        base = (ow % 2) * 64 + (ow // 2) * 16
        b2row[0, base:base + 16] = b2
        for ki in range(5):
            for kj in range(5):
                for ci in range(6):
                    w2t[ki, (ow + kj) * 6 + ci, base:base + 16] = w2[:, ci, ki, kj]

    # even-row selection matrices (height pooling)
    sel1 = np.zeros((12, 23), np.float32)
    sel1[np.arange(12), 2 * np.arange(12)] = 1.0
    sel2 = np.zeros((4, 7), np.float32)
    sel2[np.arange(4), 2 * np.arange(4)] = 1.0

    # fc1: torch flatten index f = co*16 + h*4 + w; split into 4 row blocks
    # indexed by pooled row h, rows inside a block ordered w*16 + co; pad out->128
    fc1w = np.zeros((4, 64, 128), np.float32)
    for h in range(4):
        for w in range(4):
            for co in range(16):
                fc1w[h, w * 16 + co, :120] = fc1_w[:, co * 16 + h * 4 + w]
    fc1b = np.zeros((1, 128), np.float32); fc1b[0, :120] = fc1_b

    fc2w = np.zeros((128, 128), np.float32); fc2w[:120, :84] = fc2_w.T
    fc2b = np.zeros((1, 128), np.float32); fc2b[0, :84] = fc2_b

    fc3w = np.zeros((128, 2), np.float32); fc3w[:84, :] = fc3_w.T
    fc3b = fc3_b.reshape(1, 2).astype(np.float32)

    fcw = fc_w.T.astype(np.float32)                        # (2, 10)
    fcb = fc_b.reshape(1, 10).astype(np.float32)

    alphas = np.asarray(p["alphas"], np.float32).reshape(1, 5)

    packed = dict(w1t=w1t, b1=b1row, w2t=w2t, b2=b2row, sel1=sel1, sel2=sel2,
                  fc1w=fc1w, fc1b=fc1b, fc2w=fc2w, fc2b=fc2b,
                  fc3w=fc3w, fc3b=fc3b, fcw=fcw, fcb=fcb, alphas=alphas)
    return {k: jnp.asarray(v) for k, v in packed.items()}


# --------------------------- pure-JAX reference ------------------------------

def reference_forward(x, p):
    prelu = lambda v, a: jnp.where(v >= 0.0, v, a * v)
    al = p["alphas"]

    def conv(v, w, b):
        out = lax.conv_general_dilated(
            v, w, window_strides=(1, 1), padding="VALID",
            dimension_numbers=("NCHW", "OIHW", "NCHW"),
            precision=lax.Precision.HIGHEST)
        return out + b[None, :, None, None]

    def pool(v):
        return lax.reduce_window(v, -jnp.inf, lax.max,
                                 (1, 1, 2, 2), (1, 1, 2, 2), "VALID")

    dot = lambda u, w: jnp.dot(u, w.T, precision=lax.Precision.HIGHEST)

    y = pool(prelu(conv(x, p["w1"], p["b1"]), al[0]))
    y = pool(prelu(conv(y, p["w2"], p["b2"]), al[1]))
    y = y.reshape(y.shape[0], -1)
    y = prelu(dot(y, p["fc1_w"]) + p["fc1_b"], al[2])
    y = prelu(dot(y, p["fc2_w"]) + p["fc2_b"], al[3])
    logit = prelu(dot(y, p["fc3_w"]) + p["fc3_b"], al[4])
    yy = dot(logit, p["fc_w"]) + p["fc_b"]
    m = jnp.max(yy, axis=1, keepdims=True)
    logp = yy - (m + jnp.log(jnp.sum(jnp.exp(yy - m), axis=1, keepdims=True)))
    return logit, logp


# ----------------------------------- main ------------------------------------

if __name__ == "__main__":
    key = jax.random.PRNGKey(0)
    pkey, xkey = jax.random.split(key)
    torch_params = init_torch_params(pkey)
    kparams = pack_params(torch_params)

    # MNIST-shaped input: batch=2, 1 channel, 28x28 (so the flatten is 256).
    x = jax.random.normal(xkey, (2, 1, 28, 28), jnp.float32)

    logit, logp = lenet_forward(x, kparams)
    logit, logp = jax.block_until_ready((logit, logp))

    assert logit.shape == (2, 2) and logp.shape == (2, 10)
    row_sums = jnp.exp(logp).sum(axis=1)
    assert bool(jnp.all(jnp.abs(row_sums - 1.0) < 1e-4))

    # structural self-check against a pure-JAX reference
    ref_logit, ref_logp = reference_forward(x, torch_params)
    assert float(jnp.max(jnp.abs(logit - ref_logit))) < 5e-2
    assert float(jnp.max(jnp.abs(logp - ref_logp))) < 5e-2

    print("KERNEL_OK")
</pallas_src>

<mosaic_0001>
module attributes {stable_mosaic.version = 11 : i64} {
  func.func @lenet_kernel(%arg0: i32, %arg1: memref<1x1x28x28xf32, #tpu.memory_space<vmem>>, %arg2: memref<5x28x256xf32, #tpu.memory_space<vmem>>, %arg3: memref<1x256xf32, #tpu.memory_space<vmem>>, %arg4: memref<5x72x128xf32, #tpu.memory_space<vmem>>, %arg5: memref<1x128xf32, #tpu.memory_space<vmem>>, %arg6: memref<12x23xf32, #tpu.memory_space<vmem>>, %arg7: memref<4x7xf32, #tpu.memory_space<vmem>>, %arg8: memref<4x64x128xf32, #tpu.memory_space<vmem>>, %arg9: memref<1x128xf32, #tpu.memory_space<vmem>>, %arg10: memref<128x128xf32, #tpu.memory_space<vmem>>, %arg11: memref<1x128xf32, #tpu.memory_space<vmem>>, %arg12: memref<128x2xf32, #tpu.memory_space<vmem>>, %arg13: memref<1x2xf32, #tpu.memory_space<vmem>>, %arg14: memref<2x10xf32, #tpu.memory_space<vmem>>, %arg15: memref<1x10xf32, #tpu.memory_space<vmem>>, %arg16: memref<1x5xf32, #tpu.memory_space<vmem>>, %arg17: memref<1x1x2xf32, #tpu.memory_space<vmem>>, %arg18: memref<1x1x10xf32, #tpu.memory_space<vmem>>) attributes {dimension_semantics = [#tpu.dimension_semantics<parallel>], iteration_bounds = array<i64: 2>, scalar_prefetch = 0 : i64, scratch_operands = 0 : i64, tpu.core_type = #tpu.core_type<tc>, window_params = [{transform_indices = @transform_0, window_bounds = array<i64: 1, 1, 28, 28>}, {pipeline_mode = #tpu.pipeline_mode<synchronous>, transform_indices = @transform_1, window_bounds = array<i64: 5, 28, 256>}, {pipeline_mode = #tpu.pipeline_mode<synchronous>, transform_indices = @transform_2, window_bounds = array<i64: 1, 256>}, {pipeline_mode = #tpu.pipeline_mode<synchronous>, transform_indices = @transform_3, window_bounds = array<i64: 5, 72, 128>}, {pipeline_mode = #tpu.pipeline_mode<synchronous>, transform_indices = @transform_4, window_bounds = array<i64: 1, 128>}, {pipeline_mode = #tpu.pipeline_mode<synchronous>, transform_indices = @transform_5, window_bounds = array<i64: 12, 23>}, {pipeline_mode = #tpu.pipeline_mode<synchronous>, transform_indices = @transform_6, window_bounds = array<i64: 4, 7>}, {pipeline_mode = #tpu.pipeline_mode<synchronous>, transform_indices = @transform_7, window_bounds = array<i64: 4, 64, 128>}, {pipeline_mode = #tpu.pipeline_mode<synchronous>, transform_indices = @transform_8, window_bounds = array<i64: 1, 128>}, {pipeline_mode = #tpu.pipeline_mode<synchronous>, transform_indices = @transform_9, window_bounds = array<i64: 128, 128>}, {pipeline_mode = #tpu.pipeline_mode<synchronous>, transform_indices = @transform_10, window_bounds = array<i64: 1, 128>}, {pipeline_mode = #tpu.pipeline_mode<synchronous>, transform_indices = @transform_11, window_bounds = array<i64: 128, 2>}, {pipeline_mode = #tpu.pipeline_mode<synchronous>, transform_indices = @transform_12, window_bounds = array<i64: 1, 2>}, {pipeline_mode = #tpu.pipeline_mode<synchronous>, transform_indices = @transform_13, window_bounds = array<i64: 2, 10>}, {pipeline_mode = #tpu.pipeline_mode<synchronous>, transform_indices = @transform_14, window_bounds = array<i64: 1, 10>}, {pipeline_mode = #tpu.pipeline_mode<synchronous>, transform_indices = @transform_15, window_bounds = array<i64: 1, 5>}, {transform_indices = @transform_16, window_bounds = array<i64: 1, 1, 2>}, {transform_indices = @transform_17, window_bounds = array<i64: 1, 1, 10>}]} {
    %c0 = arith.constant 0 : index
    %c0_0 = arith.constant 0 : index
    %c0_1 = arith.constant 0 : index
    %c0_2 = arith.constant 0 : index
    %0 = vector.load %arg1[%c0, %c0_0, %c0_1, %c0_2] : memref<1x1x28x28xf32, #tpu.memory_space<vmem>>, vector<1x1x24x28xf32>
    %1 = vector.shape_cast %0 : vector<1x1x24x28xf32> to vector<24x28xf32>
    %c0_3 = arith.constant 0 : index
    %c0_4 = arith.constant 0 : index
    %c0_5 = arith.constant 0 : index
    %2 = vector.load %arg2[%c0_3, %c0_4, %c0_5] : memref<5x28x256xf32, #tpu.memory_space<vmem>>, vector<1x28x256xf32>
    %3 = vector.shape_cast %2 : vector<1x28x256xf32> to vector<28x256xf32>
    %cst = arith.constant dense<0.000000e+00> : vector<24x256xf32>
    %4 = tpu.matmul %1, %3, %cst {dimension_numbers = #tpu.dot_dimension_numbers<[1], [0], [0], [1], [0, 0, 1, 1], [], []>} : vector<24x28xf32>, vector<28x256xf32>, vector<24x256xf32> -> vector<24x256xf32>
    %c0_6 = arith.constant 0 : index
    %c0_7 = arith.constant 0 : index
    %c1 = arith.constant 1 : index
    %c0_8 = arith.constant 0 : index
    %5 = vector.load %arg1[%c0_6, %c0_7, %c1, %c0_8] : memref<1x1x28x28xf32, #tpu.memory_space<vmem>>, vector<1x1x24x28xf32>
    %6 = vector.shape_cast %5 : vector<1x1x24x28xf32> to vector<24x28xf32>
    %c1_9 = arith.constant 1 : index
    %c0_10 = arith.constant 0 : index
    %c0_11 = arith.constant 0 : index
    %7 = vector.load %arg2[%c1_9, %c0_10, %c0_11] : memref<5x28x256xf32, #tpu.memory_space<vmem>>, vector<1x28x256xf32>
    %8 = vector.shape_cast %7 : vector<1x28x256xf32> to vector<28x256xf32>
    %cst_12 = arith.constant dense<0.000000e+00> : vector<24x256xf32>
    %9 = tpu.matmul %6, %8, %cst_12 {dimension_numbers = #tpu.dot_dimension_numbers<[1], [0], [0], [1], [0, 0, 1, 1], [], []>} : vector<24x28xf32>, vector<28x256xf32>, vector<24x256xf32> -> vector<24x256xf32>
    %10 = arith.addf %4, %9 : vector<24x256xf32>
    %c0_13 = arith.constant 0 : index
    %c0_14 = arith.constant 0 : index
    %c2 = arith.constant 2 : index
    %c0_15 = arith.constant 0 : index
    %11 = vector.load %arg1[%c0_13, %c0_14, %c2, %c0_15] : memref<1x1x28x28xf32, #tpu.memory_space<vmem>>, vector<1x1x24x28xf32>
    %12 = vector.shape_cast %11 : vector<1x1x24x28xf32> to vector<24x28xf32>
    %c2_16 = arith.constant 2 : index
    %c0_17 = arith.constant 0 : index
    %c0_18 = arith.constant 0 : index
    %13 = vector.load %arg2[%c2_16, %c0_17, %c0_18] : memref<5x28x256xf32, #tpu.memory_space<vmem>>, vector<1x28x256xf32>
    %14 = vector.shape_cast %13 : vector<1x28x256xf32> to vector<28x256xf32>
    %cst_19 = arith.constant dense<0.000000e+00> : vector<24x256xf32>
    %15 = tpu.matmul %12, %14, %cst_19 {dimension_numbers = #tpu.dot_dimension_numbers<[1], [0], [0], [1], [0, 0, 1, 1], [], []>} : vector<24x28xf32>, vector<28x256xf32>, vector<24x256xf32> -> vector<24x256xf32>
    %16 = arith.addf %10, %15 : vector<24x256xf32>
    %c0_20 = arith.constant 0 : index
    %c0_21 = arith.constant 0 : index
    %c3 = arith.constant 3 : index
    %c0_22 = arith.constant 0 : index
    %17 = vector.load %arg1[%c0_20, %c0_21, %c3, %c0_22] : memref<1x1x28x28xf32, #tpu.memory_space<vmem>>, vector<1x1x24x28xf32>
    %18 = vector.shape_cast %17 : vector<1x1x24x28xf32> to vector<24x28xf32>
    %c3_23 = arith.constant 3 : index
    %c0_24 = arith.constant 0 : index
    %c0_25 = arith.constant 0 : index
    %19 = vector.load %arg2[%c3_23, %c0_24, %c0_25] : memref<5x28x256xf32, #tpu.memory_space<vmem>>, vector<1x28x256xf32>
    %20 = vector.shape_cast %19 : vector<1x28x256xf32> to vector<28x256xf32>
    %cst_26 = arith.constant dense<0.000000e+00> : vector<24x256xf32>
    %21 = tpu.matmul %18, %20, %cst_26 {dimension_numbers = #tpu.dot_dimension_numbers<[1], [0], [0], [1], [0, 0, 1, 1], [], []>} : vector<24x28xf32>, vector<28x256xf32>, vector<24x256xf32> -> vector<24x256xf32>
    %22 = arith.addf %16, %21 : vector<24x256xf32>
    %c0_27 = arith.constant 0 : index
    %c0_28 = arith.constant 0 : index
    %c4 = arith.constant 4 : index
    %c0_29 = arith.constant 0 : index
    %23 = vector.load %arg1[%c0_27, %c0_28, %c4, %c0_29] : memref<1x1x28x28xf32, #tpu.memory_space<vmem>>, vector<1x1x24x28xf32>
    %24 = vector.shape_cast %23 : vector<1x1x24x28xf32> to vector<24x28xf32>
    %c4_30 = arith.constant 4 : index
    %c0_31 = arith.constant 0 : index
    %c0_32 = arith.constant 0 : index
    %25 = vector.load %arg2[%c4_30, %c0_31, %c0_32] : memref<5x28x256xf32, #tpu.memory_space<vmem>>, vector<1x28x256xf32>
    %26 = vector.shape_cast %25 : vector<1x28x256xf32> to vector<28x256xf32>
    %cst_33 = arith.constant dense<0.000000e+00> : vector<24x256xf32>
    %27 = tpu.matmul %24, %26, %cst_33 {dimension_numbers = #tpu.dot_dimension_numbers<[1], [0], [0], [1], [0, 0, 1, 1], [], []>} : vector<24x28xf32>, vector<28x256xf32>, vector<24x256xf32> -> vector<24x256xf32>
    %28 = arith.addf %22, %27 : vector<24x256xf32>
    %c0_34 = arith.constant 0 : index
    %c0_35 = arith.constant 0 : index
    %29 = vector.load %arg3[%c0_34, %c0_35] : memref<1x256xf32, #tpu.memory_space<vmem>>, vector<1x256xf32>
    %30 = vector.broadcast %29 : vector<1x256xf32> to vector<24x256xf32>
    %31 = arith.addf %28, %30 : vector<24x256xf32>
    %c0_36 = arith.constant 0 : index
    %c0_37 = arith.constant 0 : index
    %32 = vector.load %arg16[%c0_36, %c0_37] : memref<1x5xf32, #tpu.memory_space<vmem>>, vector<1x1xf32>
    %cst_38 = arith.constant 0.000000e+00 : f32
    %33 = vector.broadcast %cst_38 : f32 to vector<24x256xf32>
    %34 = arith.cmpf oge, %31, %33 : vector<24x256xf32>
    %35 = vector.broadcast %32 : vector<1x1xf32> to vector<24x256xf32>
    %36 = arith.mulf %35, %31 : vector<24x256xf32>
    %37 = arith.select %34, %31, %36 : vector<24x256xi1>, vector<24x256xf32>
    %38 = vector.extract_strided_slice %37 {offsets = [0, 0], sizes = [24, 72], strides = [1, 1]} : vector<24x256xf32> to vector<24x72xf32>
    %39 = vector.extract_strided_slice %37 {offsets = [0, 128], sizes = [24, 72], strides = [1, 1]} : vector<24x256xf32> to vector<24x72xf32>
    %40 = arith.maximumf %38, %39 : vector<24x72xf32>
    %41 = vector.extract_strided_slice %40 {offsets = [0, 0], sizes = [23, 72], strides = [1, 1]} : vector<24x72xf32> to vector<23x72xf32>
    %42 = vector.extract_strided_slice %40 {offsets = [1, 0], sizes = [23, 72], strides = [1, 1]} : vector<24x72xf32> to vector<23x72xf32>
    %43 = arith.maximumf %41, %42 : vector<23x72xf32>
    %c0_39 = arith.constant 0 : index
    %c0_40 = arith.constant 0 : index
    %44 = vector.load %arg6[%c0_39, %c0_40] : memref<12x23xf32, #tpu.memory_space<vmem>>, vector<12x23xf32>
    %cst_41 = arith.constant dense<0.000000e+00> : vector<12x72xf32>
    %45 = tpu.matmul %44, %43, %cst_41 {dimension_numbers = #tpu.dot_dimension_numbers<[1], [0], [0], [1], [0, 0, 1, 1], [], []>} : vector<12x23xf32>, vector<23x72xf32>, vector<12x72xf32> -> vector<12x72xf32>
    %46 = vector.extract_strided_slice %45 {offsets = [0, 0], sizes = [8, 72], strides = [1, 1]} : vector<12x72xf32> to vector<8x72xf32>
    %c0_42 = arith.constant 0 : index
    %c0_43 = arith.constant 0 : index
    %c0_44 = arith.constant 0 : index
    %47 = vector.load %arg4[%c0_42, %c0_43, %c0_44] : memref<5x72x128xf32, #tpu.memory_space<vmem>>, vector<1x72x128xf32>
    %48 = vector.shape_cast %47 : vector<1x72x128xf32> to vector<72x128xf32>
    %cst_45 = arith.constant dense<0.000000e+00> : vector<8x128xf32>
    %49 = tpu.matmul %46, %48, %cst_45 {dimension_numbers = #tpu.dot_dimension_numbers<[1], [0], [0], [1], [0, 0, 1, 1], [], []>} : vector<8x72xf32>, vector<72x128xf32>, vector<8x128xf32> -> vector<8x128xf32>
    %50 = vector.extract_strided_slice %45 {offsets = [1, 0], sizes = [8, 72], strides = [1, 1]} : vector<12x72xf32> to vector<8x72xf32>
    %c1_46 = arith.constant 1 : index
    %c0_47 = arith.constant 0 : index
    %c0_48 = arith.constant 0 : index
    %51 = vector.load %arg4[%c1_46, %c0_47, %c0_48] : memref<5x72x128xf32, #tpu.memory_space<vmem>>, vector<1x72x128xf32>
    %52 = vector.shape_cast %51 : vector<1x72x128xf32> to vector<72x128xf32>
    %cst_49 = arith.constant dense<0.000000e+00> : vector<8x128xf32>
    %53 = tpu.matmul %50, %52, %cst_49 {dimension_numbers = #tpu.dot_dimension_numbers<[1], [0], [0], [1], [0, 0, 1, 1], [], []>} : vector<8x72xf32>, vector<72x128xf32>, vector<8x128xf32> -> vector<8x128xf32>
    %54 = arith.addf %49, %53 : vector<8x128xf32>
    %55 = vector.extract_strided_slice %45 {offsets = [2, 0], sizes = [8, 72], strides = [1, 1]} : vector<12x72xf32> to vector<8x72xf32>
    %c2_50 = arith.constant 2 : index
    %c0_51 = arith.constant 0 : index
    %c0_52 = arith.constant 0 : index
    %56 = vector.load %arg4[%c2_50, %c0_51, %c0_52] : memref<5x72x128xf32, #tpu.memory_space<vmem>>, vector<1x72x128xf32>
    %57 = vector.shape_cast %56 : vector<1x72x128xf32> to vector<72x128xf32>
    %cst_53 = arith.constant dense<0.000000e+00> : vector<8x128xf32>
    %58 = tpu.matmul %55, %57, %cst_53 {dimension_numbers = #tpu.dot_dimension_numbers<[1], [0], [0], [1], [0, 0, 1, 1], [], []>} : vector<8x72xf32>, vector<72x128xf32>, vector<8x128xf32> -> vector<8x128xf32>
    %59 = arith.addf %54, %58 : vector<8x128xf32>
    %60 = vector.extract_strided_slice %45 {offsets = [3, 0], sizes = [8, 72], strides = [1, 1]} : vector<12x72xf32> to vector<8x72xf32>
    %c3_54 = arith.constant 3 : index
    %c0_55 = arith.constant 0 : index
    %c0_56 = arith.constant 0 : index
    %61 = vector.load %arg4[%c3_54, %c0_55, %c0_56] : memref<5x72x128xf32, #tpu.memory_space<vmem>>, vector<1x72x128xf32>
    %62 = vector.shape_cast %61 : vector<1x72x128xf32> to vector<72x128xf32>
    %cst_57 = arith.constant dense<0.000000e+00> : vector<8x128xf32>
    %63 = tpu.matmul %60, %62, %cst_57 {dimension_numbers = #tpu.dot_dimension_numbers<[1], [0], [0], [1], [0, 0, 1, 1], [], []>} : vector<8x72xf32>, vector<72x128xf32>, vector<8x128xf32> -> vector<8x128xf32>
    %64 = arith.addf %59, %63 : vector<8x128xf32>
    %65 = vector.extract_strided_slice %45 {offsets = [4, 0], sizes = [8, 72], strides = [1, 1]} : vector<12x72xf32> to vector<8x72xf32>
    %c4_58 = arith.constant 4 : index
    %c0_59 = arith.constant 0 : index
    %c0_60 = arith.constant 0 : index
    %66 = vector.load %arg4[%c4_58, %c0_59, %c0_60] : memref<5x72x128xf32, #tpu.memory_space<vmem>>, vector<1x72x128xf32>
    %67 = vector.shape_cast %66 : vector<1x72x128xf32> to vector<72x128xf32>
    %cst_61 = arith.constant dense<0.000000e+00> : vector<8x128xf32>
    %68 = tpu.matmul %65, %67, %cst_61 {dimension_numbers = #tpu.dot_dimension_numbers<[1], [0], [0], [1], [0, 0, 1, 1], [], []>} : vector<8x72xf32>, vector<72x128xf32>, vector<8x128xf32> -> vector<8x128xf32>
    %69 = arith.addf %64, %68 : vector<8x128xf32>
    %c0_62 = arith.constant 0 : index
    %c0_63 = arith.constant 0 : index
    %70 = vector.load %arg5[%c0_62, %c0_63] : memref<1x128xf32, #tpu.memory_space<vmem>>, vector<1x128xf32>
    %71 = vector.broadcast %70 : vector<1x128xf32> to vector<8x128xf32>
    %72 = arith.addf %69, %71 : vector<8x128xf32>
    %c0_64 = arith.constant 0 : index
    %c1_65 = arith.constant 1 : index
    %73 = vector.load %arg16[%c0_64, %c1_65] : memref<1x5xf32, #tpu.memory_space<vmem>>, vector<1x1xf32>
    %cst_66 = arith.constant 0.000000e+00 : f32
    %74 = vector.broadcast %cst_66 : f32 to vector<8x128xf32>
    %75 = arith.cmpf oge, %72, %74 : vector<8x128xf32>
    %76 = vector.broadcast %73 : vector<1x1xf32> to vector<8x128xf32>
    %77 = arith.mulf %76, %72 : vector<8x128xf32>
    %78 = arith.select %75, %72, %77 : vector<8x128xi1>, vector<8x128xf32>
    %79 = vector.extract_strided_slice %78 {offsets = [0, 0], sizes = [8, 64], strides = [1, 1]} : vector<8x128xf32> to vector<8x64xf32>
    %80 = vector.extract_strided_slice %78 {offsets = [0, 64], sizes = [8, 64], strides = [1, 1]} : vector<8x128xf32> to vector<8x64xf32>
    %81 = arith.maximumf %79, %80 : vector<8x64xf32>
    %82 = vector.extract_strided_slice %81 {offsets = [0, 0], sizes = [7, 64], strides = [1, 1]} : vector<8x64xf32> to vector<7x64xf32>
    %83 = vector.extract_strided_slice %81 {offsets = [1, 0], sizes = [7, 64], strides = [1, 1]} : vector<8x64xf32> to vector<7x64xf32>
    %84 = arith.maximumf %82, %83 : vector<7x64xf32>
    %c0_67 = arith.constant 0 : index
    %c0_68 = arith.constant 0 : index
    %85 = vector.load %arg7[%c0_67, %c0_68] : memref<4x7xf32, #tpu.memory_space<vmem>>, vector<4x7xf32>
    %cst_69 = arith.constant dense<0.000000e+00> : vector<4x64xf32>
    %86 = tpu.matmul %85, %84, %cst_69 {dimension_numbers = #tpu.dot_dimension_numbers<[1], [0], [0], [1], [0, 0, 1, 1], [], []>} : vector<4x7xf32>, vector<7x64xf32>, vector<4x64xf32> -> vector<4x64xf32>
    %c0_70 = arith.constant 0 : index
    %c0_71 = arith.constant 0 : index
    %87 = vector.load %arg9[%c0_70, %c0_71] : memref<1x128xf32, #tpu.memory_space<vmem>>, vector<1x128xf32>
    %88 = vector.extract_strided_slice %86 {offsets = [0, 0], sizes = [1, 64], strides = [1, 1]} : vector<4x64xf32> to vector<1x64xf32>
    %c0_72 = arith.constant 0 : index
    %c0_73 = arith.constant 0 : index
    %c0_74 = arith.constant 0 : index
    %89 = vector.load %arg8[%c0_72, %c0_73, %c0_74] : memref<4x64x128xf32, #tpu.memory_space<vmem>>, vector<1x64x128xf32>
    %90 = vector.shape_cast %89 : vector<1x64x128xf32> to vector<64x128xf32>
    %cst_75 = arith.constant dense<0.000000e+00> : vector<1x128xf32>
    %91 = tpu.matmul %88, %90, %cst_75 {dimension_numbers = #tpu.dot_dimension_numbers<[1], [0], [0], [1], [0, 0, 1, 1], [], []>} : vector<1x64xf32>, vector<64x128xf32>, vector<1x128xf32> -> vector<1x128xf32>
    %92 = arith.addf %87, %91 : vector<1x128xf32>
    %93 = vector.extract_strided_slice %86 {offsets = [1, 0], sizes = [1, 64], strides = [1, 1]} : vector<4x64xf32> to vector<1x64xf32>
    %c1_76 = arith.constant 1 : index
    %c0_77 = arith.constant 0 : index
    %c0_78 = arith.constant 0 : index
    %94 = vector.load %arg8[%c1_76, %c0_77, %c0_78] : memref<4x64x128xf32, #tpu.memory_space<vmem>>, vector<1x64x128xf32>
    %95 = vector.shape_cast %94 : vector<1x64x128xf32> to vector<64x128xf32>
    %cst_79 = arith.constant dense<0.000000e+00> : vector<1x128xf32>
    %96 = tpu.matmul %93, %95, %cst_79 {dimension_numbers = #tpu.dot_dimension_numbers<[1], [0], [0], [1], [0, 0, 1, 1], [], []>} : vector<1x64xf32>, vector<64x128xf32>, vector<1x128xf32> -> vector<1x128xf32>
    %97 = arith.addf %92, %96 : vector<1x128xf32>
    %98 = vector.extract_strided_slice %86 {offsets = [2, 0], sizes = [1, 64], strides = [1, 1]} : vector<4x64xf32> to vector<1x64xf32>
    %c2_80 = arith.constant 2 : index
    %c0_81 = arith.constant 0 : index
    %c0_82 = arith.constant 0 : index
    %99 = vector.load %arg8[%c2_80, %c0_81, %c0_82] : memref<4x64x128xf32, #tpu.memory_space<vmem>>, vector<1x64x128xf32>
    %100 = vector.shape_cast %99 : vector<1x64x128xf32> to vector<64x128xf32>
    %cst_83 = arith.constant dense<0.000000e+00> : vector<1x128xf32>
    %101 = tpu.matmul %98, %100, %cst_83 {dimension_numbers = #tpu.dot_dimension_numbers<[1], [0], [0], [1], [0, 0, 1, 1], [], []>} : vector<1x64xf32>, vector<64x128xf32>, vector<1x128xf32> -> vector<1x128xf32>
    %102 = arith.addf %97, %101 : vector<1x128xf32>
    %103 = vector.extract_strided_slice %86 {offsets = [3, 0], sizes = [1, 64], strides = [1, 1]} : vector<4x64xf32> to vector<1x64xf32>
    %c3_84 = arith.constant 3 : index
    %c0_85 = arith.constant 0 : index
    %c0_86 = arith.constant 0 : index
    %104 = vector.load %arg8[%c3_84, %c0_85, %c0_86] : memref<4x64x128xf32, #tpu.memory_space<vmem>>, vector<1x64x128xf32>
    %105 = vector.shape_cast %104 : vector<1x64x128xf32> to vector<64x128xf32>
    %cst_87 = arith.constant dense<0.000000e+00> : vector<1x128xf32>
    %106 = tpu.matmul %103, %105, %cst_87 {dimension_numbers = #tpu.dot_dimension_numbers<[1], [0], [0], [1], [0, 0, 1, 1], [], []>} : vector<1x64xf32>, vector<64x128xf32>, vector<1x128xf32> -> vector<1x128xf32>
    %107 = arith.addf %102, %106 : vector<1x128xf32>
    %c0_88 = arith.constant 0 : index
    %c2_89 = arith.constant 2 : index
    %108 = vector.load %arg16[%c0_88, %c2_89] : memref<1x5xf32, #tpu.memory_space<vmem>>, vector<1x1xf32>
    %cst_90 = arith.constant 0.000000e+00 : f32
    %109 = vector.broadcast %cst_90 : f32 to vector<1x128xf32>
    %110 = arith.cmpf oge, %107, %109 : vector<1x128xf32>
    %111 = vector.broadcast %108 : vector<1x1xf32> to vector<1x128xf32>
    %112 = arith.mulf %111, %107 : vector<1x128xf32>
    %113 = arith.select %110, %107, %112 : vector<1x128xi1>, vector<1x128xf32>
    %c0_91 = arith.constant 0 : index
    %c0_92 = arith.constant 0 : index
    %114 = vector.load %arg10[%c0_91, %c0_92] : memref<128x128xf32, #tpu.memory_space<vmem>>, vector<128x128xf32>
    %cst_93 = arith.constant dense<0.000000e+00> : vector<1x128xf32>
    %115 = tpu.matmul %113, %114, %cst_93 {dimension_numbers = #tpu.dot_dimension_numbers<[1], [0], [0], [1], [0, 0, 1, 1], [], []>} : vector<1x128xf32>, vector<128x128xf32>, vector<1x128xf32> -> vector<1x128xf32>
    %c0_94 = arith.constant 0 : index
    %c0_95 = arith.constant 0 : index
    %116 = vector.load %arg11[%c0_94, %c0_95] : memref<1x128xf32, #tpu.memory_space<vmem>>, vector<1x128xf32>
    %117 = arith.addf %115, %116 : vector<1x128xf32>
    %c0_96 = arith.constant 0 : index
    %c3_97 = arith.constant 3 : index
    %118 = vector.load %arg16[%c0_96, %c3_97] : memref<1x5xf32, #tpu.memory_space<vmem>>, vector<1x1xf32>
    %cst_98 = arith.constant 0.000000e+00 : f32
    %119 = vector.broadcast %cst_98 : f32 to vector<1x128xf32>
    %120 = arith.cmpf oge, %117, %119 : vector<1x128xf32>
    %121 = vector.broadcast %118 : vector<1x1xf32> to vector<1x128xf32>
    %122 = arith.mulf %121, %117 : vector<1x128xf32>
    %123 = arith.select %120, %117, %122 : vector<1x128xi1>, vector<1x128xf32>
    %c0_99 = arith.constant 0 : index
    %c0_100 = arith.constant 0 : index
    %124 = vector.load %arg12[%c0_99, %c0_100] : memref<128x2xf32, #tpu.memory_space<vmem>>, vector<128x2xf32>
    %cst_101 = arith.constant dense<0.000000e+00> : vector<1x2xf32>
    %125 = tpu.matmul %123, %124, %cst_101 {dimension_numbers = #tpu.dot_dimension_numbers<[1], [0], [0], [1], [0, 0, 1, 1], [], []>} : vector<1x128xf32>, vector<128x2xf32>, vector<1x2xf32> -> vector<1x2xf32>
    %c0_102 = arith.constant 0 : index
    %c0_103 = arith.constant 0 : index
    %126 = vector.load %arg13[%c0_102, %c0_103] : memref<1x2xf32, #tpu.memory_space<vmem>>, vector<1x2xf32>
    %127 = arith.addf %125, %126 : vector<1x2xf32>
    %c0_104 = arith.constant 0 : index
    %c4_105 = arith.constant 4 : index
    %128 = vector.load %arg16[%c0_104, %c4_105] : memref<1x5xf32, #tpu.memory_space<vmem>>, vector<1x1xf32>
    %cst_106 = arith.constant 0.000000e+00 : f32
    %129 = vector.broadcast %cst_106 : f32 to vector<1x2xf32>
    %130 = arith.cmpf oge, %127, %129 : vector<1x2xf32>
    %131 = vector.broadcast %128 : vector<1x1xf32> to vector<1x2xf32>
    %132 = arith.mulf %131, %127 : vector<1x2xf32>
    %133 = arith.select %130, %127, %132 : vector<1x2xi1>, vector<1x2xf32>
    %c0_107 = arith.constant 0 : index
    %c0_108 = arith.constant 0 : index
    %c0_109 = arith.constant 0 : index
    %134 = vector.load %arg17[%c0_107, %c0_108, %c0_109] : memref<1x1x2xf32, #tpu.memory_space<vmem>>, vector<1x1x2xf32>
    %135 = vector.shape_cast %134 : vector<1x1x2xf32> to vector<1x2xf32>
    %136 = vector.shape_cast %133 : vector<1x2xf32> to vector<1x1x2xf32>
    tpu.vector_store %arg17[%c0_107, %c0_108, %c0_109], %136 {strides = array<i32>} : memref<1x1x2xf32, #tpu.memory_space<vmem>>, vector<1x1x2xf32>,
    %137 = vector.extract_strided_slice %133 {offsets = [0, 0], sizes = [1, 1], strides = [1, 1]} : vector<1x2xf32> to vector<1x1xf32>
    %c0_110 = arith.constant 0 : index
    %c0_111 = arith.constant 0 : index
    %138 = vector.load %arg14[%c0_110, %c0_111] : memref<2x10xf32, #tpu.memory_space<vmem>>, vector<1x10xf32>
    %139 = vector.broadcast %137 : vector<1x1xf32> to vector<1x10xf32>
    %140 = arith.mulf %139, %138 : vector<1x10xf32>
    %141 = vector.extract_strided_slice %133 {offsets = [0, 1], sizes = [1, 1], strides = [1, 1]} : vector<1x2xf32> to vector<1x1xf32>
    %c1_112 = arith.constant 1 : index
    %c0_113 = arith.constant 0 : index
    %142 = vector.load %arg14[%c1_112, %c0_113] : memref<2x10xf32, #tpu.memory_space<vmem>>, vector<1x10xf32>
    %143 = vector.broadcast %141 : vector<1x1xf32> to vector<1x10xf32>
    %144 = arith.mulf %143, %142 : vector<1x10xf32>
    %145 = arith.addf %140, %144 : vector<1x10xf32>
    %c0_114 = arith.constant 0 : index
    %c0_115 = arith.constant 0 : index
    %146 = vector.load %arg15[%c0_114, %c0_115] : memref<1x10xf32, #tpu.memory_space<vmem>>, vector<1x10xf32>
    %147 = arith.addf %145, %146 : vector<1x10xf32>
    %cst_116 = arith.constant dense<0xFF800000> : vector<1xf32>
    %148 = vector.multi_reduction <maximumf>, %147, %cst_116 [1] : vector<1x10xf32> to vector<1xf32>
    %149 = vector.shape_cast %148 : vector<1xf32> to vector<1x1xf32>
    %150 = vector.broadcast %149 : vector<1x1xf32> to vector<1x10xf32>
    %151 = arith.subf %147, %150 : vector<1x10xf32>
    %152 = math.exp %151 : vector<1x10xf32>
    %cst_117 = arith.constant dense<0.000000e+00> : vector<1xf32>
    %153 = vector.multi_reduction <add>, %152, %cst_117 [1] : vector<1x10xf32> to vector<1xf32>
    %154 = vector.shape_cast %153 : vector<1xf32> to vector<1x1xf32>
    %155 = math.log %154 : vector<1x1xf32>
    %156 = arith.addf %149, %155 : vector<1x1xf32>
    %157 = vector.broadcast %156 : vector<1x1xf32> to vector<1x10xf32>
    %158 = arith.subf %147, %157 : vector<1x10xf32>
    %c0_118 = arith.constant 0 : index
    %c0_119 = arith.constant 0 : index
    %c0_120 = arith.constant 0 : index
    %159 = vector.load %arg18[%c0_118, %c0_119, %c0_120] : memref<1x1x10xf32, #tpu.memory_space<vmem>>, vector<1x1x10xf32>
    %160 = vector.shape_cast %159 : vector<1x1x10xf32> to vector<1x10xf32>
    %161 = vector.shape_cast %158 : vector<1x10xf32> to vector<1x1x10xf32>
    tpu.vector_store %arg18[%c0_118, %c0_119, %c0_120], %161 {strides = array<i32>} : memref<1x1x10xf32, #tpu.memory_space<vmem>>, vector<1x1x10xf32>,
    return
  }
  func.func @transform_0(%arg0: i32) -> (i32, i32, i32, i32) {
    %c0_i32 = arith.constant 0 : i32
    %c0_i32_0 = arith.constant 0 : i32
    %c0_i32_1 = arith.constant 0 : i32
    %c0_i32_2 = arith.constant 0 : i32
    return %arg0, %c0_i32, %c0_i32_0, %c0_i32_1 : i32, i32, i32, i32
  }
  func.func @transform_1(%arg0: i32) -> (i32, i32, i32) {
    %c0_i32 = arith.constant 0 : i32
    %c0_i32_0 = arith.constant 0 : i32
    %c0_i32_1 = arith.constant 0 : i32
    %c0_i32_2 = arith.constant 0 : i32
    return %c0_i32, %c0_i32_0, %c0_i32_1 : i32, i32, i32
  }
  func.func @transform_2(%arg0: i32) -> (i32, i32) {
    %c0_i32 = arith.constant 0 : i32
    %c0_i32_0 = arith.constant 0 : i32
    %c0_i32_1 = arith.constant 0 : i32
    return %c0_i32, %c0_i32_0 : i32, i32
  }
  func.func @transform_3(%arg0: i32) -> (i32, i32, i32) {
    %c0_i32 = arith.constant 0 : i32
    %c0_i32_0 = arith.constant 0 : i32
    %c0_i32_1 = arith.constant 0 : i32
    %c0_i32_2 = arith.constant 0 : i32
    return %c0_i32, %c0_i32_0, %c0_i32_1 : i32, i32, i32
  }
  func.func @transform_4(%arg0: i32) -> (i32, i32) {
    %c0_i32 = arith.constant 0 : i32
    %c0_i32_0 = arith.constant 0 : i32
    %c0_i32_1 = arith.constant 0 : i32
    return %c0_i32, %c0_i32_0 : i32, i32
  }
  func.func @transform_5(%arg0: i32) -> (i32, i32) {
    %c0_i32 = arith.constant 0 : i32
    %c0_i32_0 = arith.constant 0 : i32
    %c0_i32_1 = arith.constant 0 : i32
    return %c0_i32, %c0_i32_0 : i32, i32
  }
  func.func @transform_6(%arg0: i32) -> (i32, i32) {
    %c0_i32 = arith.constant 0 : i32
    %c0_i32_0 = arith.constant 0 : i32
    %c0_i32_1 = arith.constant 0 : i32
    return %c0_i32, %c0_i32_0 : i32, i32
  }
  func.func @transform_7(%arg0: i32) -> (i32, i32, i32) {
    %c0_i32 = arith.constant 0 : i32
    %c0_i32_0 = arith.constant 0 : i32
    %c0_i32_1 = arith.constant 0 : i32
    %c0_i32_2 = arith.constant 0 : i32
    return %c0_i32, %c0_i32_0, %c0_i32_1 : i32, i32, i32
  }
  func.func @transform_8(%arg0: i32) -> (i32, i32) {
    %c0_i32 = arith.constant 0 : i32
    %c0_i32_0 = arith.constant 0 : i32
    %c0_i32_1 = arith.constant 0 : i32
    return %c0_i32, %c0_i32_0 : i32, i32
  }
  func.func @transform_9(%arg0: i32) -> (i32, i32) {
    %c0_i32 = arith.constant 0 : i32
    %c0_i32_0 = arith.constant 0 : i32
    %c0_i32_1 = arith.constant 0 : i32
    return %c0_i32, %c0_i32_0 : i32, i32
  }
  func.func @transform_10(%arg0: i32) -> (i32, i32) {
    %c0_i32 = arith.constant 0 : i32
    %c0_i32_0 = arith.constant 0 : i32
    %c0_i32_1 = arith.constant 0 : i32
    return %c0_i32, %c0_i32_0 : i32, i32
  }
  func.func @transform_11(%arg0: i32) -> (i32, i32) {
    %c0_i32 = arith.constant 0 : i32
    %c0_i32_0 = arith.constant 0 : i32
    %c0_i32_1 = arith.constant 0 : i32
    return %c0_i32, %c0_i32_0 : i32, i32
  }
  func.func @transform_12(%arg0: i32) -> (i32, i32) {
    %c0_i32 = arith.constant 0 : i32
    %c0_i32_0 = arith.constant 0 : i32
    %c0_i32_1 = arith.constant 0 : i32
    return %c0_i32, %c0_i32_0 : i32, i32
  }
  func.func @transform_13(%arg0: i32) -> (i32, i32) {
    %c0_i32 = arith.constant 0 : i32
    %c0_i32_0 = arith.constant 0 : i32
    %c0_i32_1 = arith.constant 0 : i32
    return %c0_i32, %c0_i32_0 : i32, i32
  }
  func.func @transform_14(%arg0: i32) -> (i32, i32) {
    %c0_i32 = arith.constant 0 : i32
    %c0_i32_0 = arith.constant 0 : i32
    %c0_i32_1 = arith.constant 0 : i32
    return %c0_i32, %c0_i32_0 : i32, i32
  }
  func.func @transform_15(%arg0: i32) -> (i32, i32) {
    %c0_i32 = arith.constant 0 : i32
    %c0_i32_0 = arith.constant 0 : i32
    %c0_i32_1 = arith.constant 0 : i32
    return %c0_i32, %c0_i32_0 : i32, i32
  }
  func.func @transform_16(%arg0: i32) -> (i32, i32, i32) {
    %c0_i32 = arith.constant 0 : i32
    %c0_i32_0 = arith.constant 0 : i32
    %c0_i32_1 = arith.constant 0 : i32
    return %arg0, %c0_i32, %c0_i32_0 : i32, i32, i32
  }
  func.func @transform_17(%arg0: i32) -> (i32, i32, i32) {
    %c0_i32 = arith.constant 0 : i32
    %c0_i32_0 = arith.constant 0 : i32
    %c0_i32_1 = arith.constant 0 : i32
    return %arg0, %c0_i32, %c0_i32_0 : i32, i32, i32
  }
}

</mosaic_0001>

<llo_original>
// kernel: lenet_forward.1
$region0: #{lenet_forward.1}
  #allocation0 [shape = 'u32[]', space=smem, size = 0x4, offset = 0x4, fixed_abs, tag = 'smem constant byte address 0x4 - core index']
  #allocation1 [shape = 'u32[72,128]{1,0:T(1,128)}', space=vmem, size = 0x9000, scoped, tag = 'internal scratch']
  %s0 = inlined_call_operand.vmem [shape: f32[2,1,28,28], index: 0, kind: input, shape index: {}]
  %s1 = inlined_call_operand.hbm [shape: f32[5,28,256], index: 1, kind: input, shape index: {}]
  %s2 = inlined_call_operand.vmem [shape: f32[1,256], index: 2, kind: input, shape index: {}]
  %s3 = inlined_call_operand.hbm [shape: f32[5,72,128], index: 3, kind: input, shape index: {}]
  %s4 = inlined_call_operand.vmem [shape: f32[1,128], index: 4, kind: input, shape index: {}]
  %s5 = inlined_call_operand.vmem [shape: f32[12,23], index: 5, kind: input, shape index: {}]
  %s6 = inlined_call_operand.vmem [shape: f32[4,7], index: 6, kind: input, shape index: {}]
  %s7 = inlined_call_operand.hbm [shape: f32[4,64,128], index: 7, kind: input, shape index: {}]
  %s8 = inlined_call_operand.vmem [shape: f32[1,128], index: 8, kind: input, shape index: {}]
  %s9 = inlined_call_operand.vmem [shape: f32[128,128], index: 9, kind: input, shape index: {}]
  %s10 = inlined_call_operand.vmem [shape: f32[1,128], index: 10, kind: input, shape index: {}]
  %s11 = inlined_call_operand.vmem [shape: f32[128,2], index: 11, kind: input, shape index: {}]
  %s12 = inlined_call_operand.vmem [shape: f32[1,2], index: 12, kind: input, shape index: {}]
  %s13 = inlined_call_operand.vmem [shape: f32[2,10], index: 13, kind: input, shape index: {}]
  %s14 = inlined_call_operand.vmem [shape: f32[1,10], index: 14, kind: input, shape index: {}]
  %s15 = inlined_call_operand.vmem [shape: f32[1,5], index: 15, kind: input, shape index: {}]
  %s16 = inlined_call_operand.hbm [shape: f32[2,1,2], index: 16, kind: output, shape index: {0}]
  %s17 = inlined_call_operand.hbm [shape: f32[2,1,10], index: 17, kind: output, shape index: {1}]
  %18 = xla_tuple %s16, %s17
  %s19 = sld [smem:[#allocation0]]
  $region117: #{lenet_forward.1} parent=0
    _
  %s21 = ssub.s32 1, %s19
  %s22 = scalar_select 0, %s21, %s19
  $region1: #{lenet_forward.1} parent=0
    #allocation2 [shape = 'u8[163840]{0}', space=vmem, size = 0x28000, scoped, tag = 'input window, operand 1, single buffered']
    #allocation3 [shape = 's32[2]{0}', space=sflag, size = 0x8, scoped, tag = 'scoped memory for lenet_forward.1']
    #allocation4 [shape = 's32[2]{0}', space=sflag, size = 0x8, scoped, tag = 'scoped memory for lenet_forward.1']
    #allocation5 [shape = 'u8[184320]{0}', space=vmem, size = 0x2d000, scoped, tag = 'input window, operand 3, single buffered']
    #allocation6 [shape = 's32[1]{0}', space=sflag, size = 0x4, scoped, tag = 'scoped memory for lenet_forward.1']
    #allocation7 [shape = 'u8[131072]{0}', space=vmem, size = 0x20000, scoped, tag = 'input window, operand 7, single buffered']
    #allocation8 [shape = 'u8[1024]{0}', space=vmem, size = 0x400, scoped, tag = 'output window, operand 0']
    #allocation9 [shape = 'u8[1024]{0}', space=vmem, size = 0x400, scoped, tag = 'output window, operand 1']
    #allocation10 [shape = 's32[2]{0}', space=sflag, size = 0x8, scoped, tag = 'scoped memory for lenet_forward.1']
    %23 = vsyncpa [#allocation3], 0
    %24 = vsyncpa [#allocation6], 0
    %25 = vsyncpa [#allocation4], 0
    %s26 = scalar_lea.sflag [#allocation4], 1
    %27 = vsyncpa %s26, 0
    %28 = vsyncpa [#allocation10], 0
    %s29 = scalar_lea.sflag [#allocation10], 1
    %30 = vsyncpa %s29, 0
    loop: start=0, step=1, limit=4
    $region2: #{lenet_forward.1} parent=1 // loop_pre_header
      _
    $region3: #{lenet_forward.1} parent=1 // loop_header
      %s32 = sphi 0, %s36
      %p33 = scmp.ge.s32.totalorder %s32, 4
      %s42 = sphi 0, %s44
      %s45 = sphi 0, %s42
      %s46 = sphi 0, %s45
      %s62 = sphi 0, %s46
      %s66 = sphi 0, %s66
      %s68 = sphi 0, %s66
      %s69 = sphi 0, %s68
      %s83 = sphi 0, %s69
      %s87 = sphi 0, %s87
      %s89 = sphi 0, %s87
      %s90 = sphi 0, %s89
      %s104 = sphi 0, %s90
      %s108 = sphi 0, %s108
      %s110 = sphi 0, %s108
      %s111 = sphi 0, %s110
      %s125 = sphi 0, %s111
      %s129 = sphi 0, %s129
      %s131 = sphi 0, %s129
      %s132 = sphi 0, %s131
      %s146 = sphi 0, %s132
      %s150 = sphi 0, %s150
      %s152 = sphi 0, %s150
      %s153 = sphi 0, %s152
      %s167 = sphi 0, %s153
      %s171 = sphi 0, %s171
      %s173 = sphi 0, %s171
      %s174 = sphi 0, %s173
      %s188 = sphi 0, %s174
      %s192 = sphi 0, %s192
      %s194 = sphi 0, %s192
      %s195 = sphi 0, %s194
      %s209 = sphi 0, %s195
      %s213 = sphi 0, %s213
      %s215 = sphi 0, %s213
      %s216 = sphi 0, %s215
      %s230 = sphi 0, %s216
      %s234 = sphi 0, %s234
      %s236 = sphi 0, %s234
      %s237 = sphi 0, %s236
      %s251 = sphi 0, %s237
      %s255 = sphi 0, %s255
      %s257 = sphi 0, %s255
      %s258 = sphi 0, %s257
      %s272 = sphi 0, %s258
      %s276 = sphi 0, %s276
      %s278 = sphi 0, %s276
      %s279 = sphi 0, %s278
      %s293 = sphi 0, %s279
      %s297 = sphi 0, %s297
      %s299 = sphi 0, %s297
      %s300 = sphi 0, %s299
      %s314 = sphi 0, %s300
      %s318 = sphi 0, %s318
      %s320 = sphi 0, %s318
      %s321 = sphi 0, %s320
      %s335 = sphi 0, %s321
      %s339 = sphi 0, %s339
      %s341 = sphi 0, %s339
      %s342 = sphi 0, %s341
      %s356 = sphi 0, %s342
      %s360 = sphi 0, %s360
      %s362 = sphi 0, %s360
      %s363 = sphi 0, %s362
      %s377 = sphi 0, %s363
      %s383 = sphi 0, %s385
      %s386 = sphi 0, %s383
      %s387 = sphi 0, %s386
      %s403 = sphi 0, %s387
      %s409 = sphi 0, %s411
      %s412 = sphi 0, %s409
      %s413 = sphi 0, %s412
      %s429 = sphi 0, %s413
    $region4: #{lenet_forward.1} parent=1 // loop_header_branch
      %35 = sbr.rel (%p33) target = $region8
    $region5: #{lenet_forward.1} parent=1 // loop_body
      %s37 = ssub.s32 %s32, 1
      %s38 = ssub.s32 %s32, 2
      %s39 = sadd.s32 %s32, 1
      %s40 = ssub.s32 %s32, %s39
      %p41 = scmp.eq.s32.totalorder %s40, 0
      %s43 = sadd.s32 %s42, 1
      %s44 = scalar_select %p41, %s42, %s43
      %p47 = pneg %p41
      %p48 = scmp.eq.s32.totalorder %s32, 1
      %p49 = por %p47, %p48
      %p50 = scmp.ne.s32.totalorder %s42, %s45
      %p51 = scmp.eq.s32.totalorder %s32, 0
      %p52 = por %p50, %p51
      %p53 = scmp.ne.s32.totalorder %s42, %s45
      %p54 = scmp.eq.s32.totalorder %s37, 1
      %p55 = por %p53, %p54
      %p56 = scmp.ne.s32.totalorder %s45, %s46
      %p57 = scmp.eq.s32.totalorder %s37, 0
      %p58 = por %p56, %p57
      %p59 = scmp.ne.s32.totalorder %s45, %s46
      %p60 = scmp.eq.s32.totalorder %s38, 1
      %p61 = por %p59, %p60
      %p63 = scmp.ne.s32.totalorder %s46, %s62
      %p64 = scmp.eq.s32.totalorder %s38, 0
      %p65 = por %p63, %p64
      %s67 = sadd.s32 %s66, 1
      %p70 = scmp.eq.s32.totalorder %s32, 1
      %p71 = scmp.ne.s32.totalorder %s66, %s68
      %p72 = scmp.eq.s32.totalorder %s32, 0
      %p73 = por %p71, %p72
      %p74 = scmp.ne.s32.totalorder %s66, %s68
      %p75 = scmp.eq.s32.totalorder %s37, 1
      %p76 = por %p74, %p75
      %p77 = scmp.ne.s32.totalorder %s68, %s69
      %p78 = scmp.eq.s32.totalorder %s37, 0
      %p79 = por %p77, %p78
      %p80 = scmp.ne.s32.totalorder %s68, %s69
      %p81 = scmp.eq.s32.totalorder %s38, 1
      %p82 = por %p80, %p81
      %p84 = scmp.ne.s32.totalorder %s69, %s83
      %p85 = scmp.eq.s32.totalorder %s38, 0
      %p86 = por %p84, %p85
      %s88 = sadd.s32 %s87, 1
      %p91 = scmp.eq.s32.totalorder %s32, 1
      %p92 = scmp.ne.s32.totalorder %s87, %s89
      %p93 = scmp.eq.s32.totalorder %s32, 0
      %p94 = por %p92, %p93
      %p95 = scmp.ne.s32.totalorder %s87, %s89
      %p96 = scmp.eq.s32.totalorder %s37, 1
      %p97 = por %p95, %p96
      %p98 = scmp.ne.s32.totalorder %s89, %s90
      %p99 = scmp.eq.s32.totalorder %s37, 0
      %p100 = por %p98, %p99
      %p101 = scmp.ne.s32.totalorder %s89, %s90
      %p102 = scmp.eq.s32.totalorder %s38, 1
      %p103 = por %p101, %p102
      %p105 = scmp.ne.s32.totalorder %s90, %s104
      %p106 = scmp.eq.s32.totalorder %s38, 0
      %p107 = por %p105, %p106
      %s109 = sadd.s32 %s108, 1
      %p112 = scmp.eq.s32.totalorder %s32, 1
      %p113 = scmp.ne.s32.totalorder %s108, %s110
      %p114 = scmp.eq.s32.totalorder %s32, 0
      %p115 = por %p113, %p114
      %p116 = scmp.ne.s32.totalorder %s108, %s110
      %p117 = scmp.eq.s32.totalorder %s37, 1
      %p118 = por %p116, %p117
      %p119 = scmp.ne.s32.totalorder %s110, %s111
      %p120 = scmp.eq.s32.totalorder %s37, 0
      %p121 = por %p119, %p120
      %p122 = scmp.ne.s32.totalorder %s110, %s111
      %p123 = scmp.eq.s32.totalorder %s38, 1
      %p124 = por %p122, %p123
      %p126 = scmp.ne.s32.totalorder %s111, %s125
      %p127 = scmp.eq.s32.totalorder %s38, 0
      %p128 = por %p126, %p127
      %s130 = sadd.s32 %s129, 1
      %p133 = scmp.eq.s32.totalorder %s32, 1
      %p134 = scmp.ne.s32.totalorder %s129, %s131
      %p135 = scmp.eq.s32.totalorder %s32, 0
      %p136 = por %p134, %p135
      %p137 = scmp.ne.s32.totalorder %s129, %s131
      %p138 = scmp.eq.s32.totalorder %s37, 1
      %p139 = por %p137, %p138
      %p140 = scmp.ne.s32.totalorder %s131, %s132
      %p141 = scmp.eq.s32.totalorder %s37, 0
      %p142 = por %p140, %p141
      %p143 = scmp.ne.s32.totalorder %s131, %s132
      %p144 = scmp.eq.s32.totalorder %s38, 1
      %p145 = por %p143, %p144
      %p147 = scmp.ne.s32.totalorder %s132, %s146
      %p148 = scmp.eq.s32.totalorder %s38, 0
      %p149 = por %p147, %p148
      %s151 = sadd.s32 %s150, 1
      %p154 = scmp.eq.s32.totalorder %s32, 1
      %p155 = scmp.ne.s32.totalorder %s150, %s152
      %p156 = scmp.eq.s32.totalorder %s32, 0
      %p157 = por %p155, %p156
      %p158 = scmp.ne.s32.totalorder %s150, %s152
      %p159 = scmp.eq.s32.totalorder %s37, 1
      %p160 = por %p158, %p159
      %p161 = scmp.ne.s32.totalorder %s152, %s153
      %p162 = scmp.eq.s32.totalorder %s37, 0
      %p163 = por %p161, %p162
      %p164 = scmp.ne.s32.totalorder %s152, %s153
      %p165 = scmp.eq.s32.totalorder %s38, 1
      %p166 = por %p164, %p165
      %p168 = scmp.ne.s32.totalorder %s153, %s167
      %p169 = scmp.eq.s32.totalorder %s38, 0
      %p170 = por %p168, %p169
      %s172 = sadd.s32 %s171, 1
      %p175 = scmp.eq.s32.totalorder %s32, 1
      %p176 = scmp.ne.s32.totalorder %s171, %s173
      %p177 = scmp.eq.s32.totalorder %s32, 0
      %p178 = por %p176, %p177
      %p179 = scmp.ne.s32.totalorder %s171, %s173
      %p180 = scmp.eq.s32.totalorder %s37, 1
      %p181 = por %p179, %p180
      %p182 = scmp.ne.s32.totalorder %s173, %s174
      %p183 = scmp.eq.s32.totalorder %s37, 0
      %p184 = por %p182, %p183
      %p185 = scmp.ne.s32.totalorder %s173, %s174
      %p186 = scmp.eq.s32.totalorder %s38, 1
      %p187 = por %p185, %p186
      %p189 = scmp.ne.s32.totalorder %s174, %s188
      %p190 = scmp.eq.s32.totalorder %s38, 0
      %p191 = por %p189, %p190
      %s193 = sadd.s32 %s192, 1
      %p196 = scmp.eq.s32.totalorder %s32, 1
      %p197 = scmp.ne.s32.totalorder %s192, %s194
      %p198 = scmp.eq.s32.totalorder %s32, 0
      %p199 = por %p197, %p198
      %p200 = scmp.ne.s32.totalorder %s192, %s194
      %p201 = scmp.eq.s32.totalorder %s37, 1
      %p202 = por %p200, %p201
      %p203 = scmp.ne.s32.totalorder %s194, %s195
      %p204 = scmp.eq.s32.totalorder %s37, 0
      %p205 = por %p203, %p204
      %p206 = scmp.ne.s32.totalorder %s194, %s195
      %p207 = scmp.eq.s32.totalorder %s38, 1
      %p208 = por %p206, %p207
      %p210 = scmp.ne.s32.totalorder %s195, %s209
      %p211 = scmp.eq.s32.totalorder %s38, 0
      %p212 = por %p210, %p211
      %s214 = sadd.s32 %s213, 1
      %p217 = scmp.eq.s32.totalorder %s32, 1
      %p218 = scmp.ne.s32.totalorder %s213, %s215
      %p219 = scmp.eq.s32.totalorder %s32, 0
      %p220 = por %p218, %p219
      %p221 = scmp.ne.s32.totalorder %s213, %s215
      %p222 = scmp.eq.s32.totalorder %s37, 1
      %p223 = por %p221, %p222
      %p224 = scmp.ne.s32.totalorder %s215, %s216
      %p225 = scmp.eq.s32.totalorder %s37, 0
      %p226 = por %p224, %p225
      %p227 = scmp.ne.s32.totalorder %s215, %s216
      %p228 = scmp.eq.s32.totalorder %s38, 1
      %p229 = por %p227, %p228
      %p231 = scmp.ne.s32.totalorder %s216, %s230
      %p232 = scmp.eq.s32.totalorder %s38, 0
      %p233 = por %p231, %p232
      %s235 = sadd.s32 %s234, 1
      %p238 = scmp.eq.s32.totalorder %s32, 1
      %p239 = scmp.ne.s32.totalorder %s234, %s236
      %p240 = scmp.eq.s32.totalorder %s32, 0
      %p241 = por %p239, %p240
      %p242 = scmp.ne.s32.totalorder %s234, %s236
      %p243 = scmp.eq.s32.totalorder %s37, 1
      %p244 = por %p242, %p243
      %p245 = scmp.ne.s32.totalorder %s236, %s237
      %p246 = scmp.eq.s32.totalorder %s37, 0
      %p247 = por %p245, %p246
      %p248 = scmp.ne.s32.totalorder %s236, %s237
      %p249 = scmp.eq.s32.totalorder %s38, 1
      %p250 = por %p248, %p249
      %p252 = scmp.ne.s32.totalorder %s237, %s251
      %p253 = scmp.eq.s32.totalorder %s38, 0
      %p254 = por %p252, %p253
      %s256 = sadd.s32 %s255, 1
      %p259 = scmp.eq.s32.totalorder %s32, 1
      %p260 = scmp.ne.s32.totalorder %s255, %s257
      %p261 = scmp.eq.s32.totalorder %s32, 0
      %p262 = por %p260, %p261
      %p263 = scmp.ne.s32.totalorder %s255, %s257
      %p264 = scmp.eq.s32.totalorder %s37, 1
      %p265 = por %p263, %p264
      %p266 = scmp.ne.s32.totalorder %s257, %s258
      %p267 = scmp.eq.s32.totalorder %s37, 0
      %p268 = por %p266, %p267
      %p269 = scmp.ne.s32.totalorder %s257, %s258
      %p270 = scmp.eq.s32.totalorder %s38, 1
      %p271 = por %p269, %p270
      %p273 = scmp.ne.s32.totalorder %s258, %s272
      %p274 = scmp.eq.s32.totalorder %s38, 0
      %p275 = por %p273, %p274
      %s277 = sadd.s32 %s276, 1
      %p280 = scmp.eq.s32.totalorder %s32, 1
      %p281 = scmp.ne.s32.totalorder %s276, %s278
      %p282 = scmp.eq.s32.totalorder %s32, 0
      %p283 = por %p281, %p282
      %p284 = scmp.ne.s32.totalorder %s276, %s278
      %p285 = scmp.eq.s32.totalorder %s37, 1
      %p286 = por %p284, %p285
      %p287 = scmp.ne.s32.totalorder %s278, %s279
      %p288 = scmp.eq.s32.totalorder %s37, 0
      %p289 = por %p287, %p288
      %p290 = scmp.ne.s32.totalorder %s278, %s279
      %p291 = scmp.eq.s32.totalorder %s38, 1
      %p292 = por %p290, %p291
      %p294 = scmp.ne.s32.totalorder %s279, %s293
      %p295 = scmp.eq.s32.totalorder %s38, 0
      %p296 = por %p294, %p295
      %s298 = sadd.s32 %s297, 1
      %p301 = scmp.eq.s32.totalorder %s32, 1
      %p302 = scmp.ne.s32.totalorder %s297, %s299
      %p303 = scmp.eq.s32.totalorder %s32, 0
      %p304 = por %p302, %p303
      %p305 = scmp.ne.s32.totalorder %s297, %s299
      %p306 = scmp.eq.s32.totalorder %s37, 1
      %p307 = por %p305, %p306
      %p308 = scmp.ne.s32.totalorder %s299, %s300
      %p309 = scmp.eq.s32.totalorder %s37, 0
      %p310 = por %p308, %p309
      %p311 = scmp.ne.s32.totalorder %s299, %s300
      %p312 = scmp.eq.s32.totalorder %s38, 1
      %p313 = por %p311, %p312
      %p315 = scmp.ne.s32.totalorder %s300, %s314
      %p316 = scmp.eq.s32.totalorder %s38, 0
      %p317 = por %p315, %p316
      %s319 = sadd.s32 %s318, 1
      %p322 = scmp.eq.s32.totalorder %s32, 1
      %p323 = scmp.ne.s32.totalorder %s318, %s320
      %p324 = scmp.eq.s32.totalorder %s32, 0
      %p325 = por %p323, %p324
      %p326 = scmp.ne.s32.totalorder %s318, %s320
      %p327 = scmp.eq.s32.totalorder %s37, 1
      %p328 = por %p326, %p327
      %p329 = scmp.ne.s32.totalorder %s320, %s321
      %p330 = scmp.eq.s32.totalorder %s37, 0
      %p331 = por %p329, %p330
      %p332 = scmp.ne.s32.totalorder %s320, %s321
      %p333 = scmp.eq.s32.totalorder %s38, 1
      %p334 = por %p332, %p333
      %p336 = scmp.ne.s32.totalorder %s321, %s335
      %p337 = scmp.eq.s32.totalorder %s38, 0
      %p338 = por %p336, %p337
      %s340 = sadd.s32 %s339, 1
      %p343 = scmp.eq.s32.totalorder %s32, 1
      %p344 = scmp.ne.s32.totalorder %s339, %s341
      %p345 = scmp.eq.s32.totalorder %s32, 0
      %p346 = por %p344, %p345
      %p347 = scmp.ne.s32.totalorder %s339, %s341
      %p348 = scmp.eq.s32.totalorder %s37, 1
      %p349 = por %p347, %p348
      %p350 = scmp.ne.s32.totalorder %s341, %s342
      %p351 = scmp.eq.s32.totalorder %s37, 0
      %p352 = por %p350, %p351
      %p353 = scmp.ne.s32.totalorder %s341, %s342
      %p354 = scmp.eq.s32.totalorder %s38, 1
      %p355 = por %p353, %p354
      %p357 = scmp.ne.s32.totalorder %s342, %s356
      %p358 = scmp.eq.s32.totalorder %s38, 0
      %p359 = por %p357, %p358
      %s361 = sadd.s32 %s360, 1
      %p364 = scmp.eq.s32.totalorder %s32, 1
      %p365 = scmp.ne.s32.totalorder %s360, %s362
      %p366 = scmp.eq.s32.totalorder %s32, 0
      %p367 = por %p365, %p366
      %p368 = scmp.ne.s32.totalorder %s360, %s362
      %p369 = scmp.eq.s32.totalorder %s37, 1
      %p370 = por %p368, %p369
      %p371 = scmp.ne.s32.totalorder %s362, %s363
      %p372 = scmp.eq.s32.totalorder %s37, 0
      %p373 = por %p371, %p372
      %p374 = scmp.ne.s32.totalorder %s362, %s363
      %p375 = scmp.eq.s32.totalorder %s38, 1
      %p376 = por %p374, %p375
      %p378 = scmp.ne.s32.totalorder %s363, %s377
      %p379 = scmp.eq.s32.totalorder %s38, 0
      %p380 = por %p378, %p379
      %s381 = ssub.s32 %s32, %s39
      %p382 = scmp.eq.s32.totalorder %s381, 0
      %s384 = sadd.s32 %s383, 1
      %s385 = scalar_select %p382, %s383, %s384
      %p388 = pneg %p382
      %p389 = scmp.eq.s32.totalorder %s32, 1
      %p390 = por %p388, %p389
      %p391 = scmp.ne.s32.totalorder %s383, %s386
      %p392 = scmp.eq.s32.totalorder %s32, 0
      %p393 = por %p391, %p392
      %p394 = scmp.ne.s32.totalorder %s383, %s386
      %p395 = scmp.eq.s32.totalorder %s37, 1
      %p396 = por %p394, %p395
      %p397 = scmp.ne.s32.totalorder %s386, %s387
      %p398 = scmp.eq.s32.totalorder %s37, 0
      %p399 = por %p397, %p398
      %p400 = scmp.ne.s32.totalorder %s386, %s387
      %p401 = scmp.eq.s32.totalorder %s38, 1
      %p402 = por %p400, %p401
      %p404 = scmp.ne.s32.totalorder %s387, %s403
      %p405 = scmp.eq.s32.totalorder %s38, 0
      %p406 = por %p404, %p405
      %s407 = ssub.s32 %s32, %s39
      %p408 = scmp.eq.s32.totalorder %s407, 0
      %s410 = sadd.s32 %s409, 1
      %s411 = scalar_select %p408, %s409, %s410
      %p414 = pneg %p408
      %p415 = scmp.eq.s32.totalorder %s32, 1
      %p416 = por %p414, %p415
      %p417 = scmp.ne.s32.totalorder %s409, %s412
      %p418 = scmp.eq.s32.totalorder %s32, 0
      %p419 = por %p417, %p418
      %p420 = scmp.ne.s32.totalorder %s409, %s412
      %p421 = scmp.eq.s32.totalorder %s37, 1
      %p422 = por %p420, %p421
      %p423 = scmp.ne.s32.totalorder %s412, %s413
      %p424 = scmp.eq.s32.totalorder %s37, 0
      %p425 = por %p423, %p424
      %p426 = scmp.ne.s32.totalorder %s412, %s413
      %p427 = scmp.eq.s32.totalorder %s38, 1
      %p428 = por %p426, %p427
      %p430 = scmp.ne.s32.totalorder %s413, %s429
      %p431 = scmp.eq.s32.totalorder %s38, 0
      %p432 = por %p430, %p431
      %p433 = scmp.le.s32.totalorder 1, %s32
      %p434 = scmp.lt.s32.totalorder %s32, 3
      %p435 = pnand %p433, %p434
      %p436 = pneg %p435
      // Predicated region
      $region9: #{lenet_forward.1} parent=5 // pred_check
        _
      $region10: #{lenet_forward.1} parent=5 // pred_check_branch
        %438 = sbr.rel (%p435) target = $region12
      $region11: #{lenet_forward.1} parent=5 // pred_region
        %s439 = ssub.s32 %s32, 1
        // Predicated region
        $region13: #{lenet_forward.1} parent=11 // pred_check
          %p440 = pneg %p79
        $region14: #{lenet_forward.1} parent=11 // pred_check_branch
          %442 = sbr.rel (%p440) target = $region16
        $region15: #{lenet_forward.1} parent=11 // pred_region
          %444 = vsyncadd [#allocation3], 0
          %s445 = sshll.u32 %s1, 4
          %s446 = int_to_ptr.hbm [resolvable:$true] %s445
          %s447 = sshll.u32 [#allocation2], 4
          %s448 = int_to_ptr.vmem [resolvable:$true] %s447
          %453 = dma.hbm_to_vmem [thread:$0]  %s446, 5120, %s448, [#allocation3], 256, 256, 16
        $region16: #{lenet_forward.1} parent=11 // pred_fallthru
          _
        // Predicated region
        $region17: #{lenet_forward.1} parent=11 // pred_check
          %p454 = pneg %p100
        $region18: #{lenet_forward.1} parent=11 // pred_check_branch
          %456 = sbr.rel (%p454) target = $region20
        $region19: #{lenet_forward.1} parent=11 // pred_region
          _
        $region20: #{lenet_forward.1} parent=11 // pred_fallthru
          _
        // Predicated region
        $region21: #{lenet_forward.1} parent=11 // pred_check
          %p457 = pneg %p121
        $region22: #{lenet_forward.1} parent=11 // pred_check_branch
          %459 = sbr.rel (%p457) target = $region24
        $region23: #{lenet_forward.1} parent=11 // pred_region
          %461 = vsyncadd [#allocation6], 0
          %s462 = sshll.u32 %s3, 4
          %s463 = int_to_ptr.hbm [resolvable:$true] %s462
          %s464 = sshll.u32 [#allocation5], 4
          %s465 = int_to_ptr.vmem [resolvable:$true] %s464
          %470 = dma.hbm_to_vmem [thread:$0]  %s463, 5760, %s465, [#allocation6], 128, 128, 8
        $region24: #{lenet_forward.1} parent=11 // pred_fallthru
          _
        // Predicated region
        $region25: #{lenet_forward.1} parent=11 // pred_check
          %p471 = pneg %p142
        $region26: #{lenet_forward.1} parent=11 // pred_check_branch
          %473 = sbr.rel (%p471) target = $region28
        $region27: #{lenet_forward.1} parent=11 // pred_region
          _
        $region28: #{lenet_forward.1} parent=11 // pred_fallthru
          _
        // Predicated region
        $region29: #{lenet_forward.1} parent=11 // pred_check
          %p474 = pneg %p163
        $region30: #{lenet_forward.1} parent=11 // pred_check_branch
          %476 = sbr.rel (%p474) target = $region32
        $region31: #{lenet_forward.1} parent=11 // pred_region
          _
        $region32: #{lenet_forward.1} parent=11 // pred_fallthru
          _
        // Predicated region
        $region33: #{lenet_forward.1} parent=11 // pred_check
          %p477 = pneg %p184
        $region34: #{lenet_forward.1} parent=11 // pred_check_branch
          %479 = sbr.rel (%p477) target = $region36
        $region35: #{lenet_forward.1} parent=11 // pred_region
          _
        $region36: #{lenet_forward.1} parent=11 // pred_fallthru
          _
        // Predicated region
        $region37: #{lenet_forward.1} parent=11 // pred_check
          %p480 = pneg %p205
        $region38: #{lenet_forward.1} parent=11 // pred_check_branch
          %482 = sbr.rel (%p480) target = $region40
        $region39: #{lenet_forward.1} parent=11 // pred_region
          %484 = vsyncadd [#allocation6], 0
          %s485 = sshll.u32 %s7, 4
          %s486 = int_to_ptr.hbm [resolvable:$true] %s485
          %s487 = sshll.u32 [#allocation7], 4
          %s488 = int_to_ptr.vmem [resolvable:$true] %s487
          %493 = dma.hbm_to_vmem [thread:$0]  %s486, 4096, %s488, [#allocation6], 128, 128, 8
        $region40: #{lenet_forward.1} parent=11 // pred_fallthru
          _
        // Predicated region
        $region41: #{lenet_forward.1} parent=11 // pred_check
          %p494 = pneg %p226
        $region42: #{lenet_forward.1} parent=11 // pred_check_branch
          %496 = sbr.rel (%p494) target = $region44
        $region43: #{lenet_forward.1} parent=11 // pred_region
          _
        $region44: #{lenet_forward.1} parent=11 // pred_fallthru
          _
        // Predicated region
        $region45: #{lenet_forward.1} parent=11 // pred_check
          %p497 = pneg %p247
        $region46: #{lenet_forward.1} parent=11 // pred_check_branch
          %499 = sbr.rel (%p497) target = $region48
        $region47: #{lenet_forward.1} parent=11 // pred_region
          _
        $region48: #{lenet_forward.1} parent=11 // pred_fallthru
          _
        // Predicated region
        $region49: #{lenet_forward.1} parent=11 // pred_check
          %p500 = pneg %p268
        $region50: #{lenet_forward.1} parent=11 // pred_check_branch
          %502 = sbr.rel (%p500) target = $region52
        $region51: #{lenet_forward.1} parent=11 // pred_region
          _
        $region52: #{lenet_forward.1} parent=11 // pred_fallthru
          _
        // Predicated region
        $region53: #{lenet_forward.1} parent=11 // pred_check
          %p503 = pneg %p289
        $region54: #{lenet_forward.1} parent=11 // pred_check_branch
          %505 = sbr.rel (%p503) target = $region56
        $region55: #{lenet_forward.1} parent=11 // pred_region
          _
        $region56: #{lenet_forward.1} parent=11 // pred_fallthru
          _
        // Predicated region
        $region57: #{lenet_forward.1} parent=11 // pred_check
          %p506 = pneg %p310
        $region58: #{lenet_forward.1} parent=11 // pred_check_branch
          %508 = sbr.rel (%p506) target = $region60
        $region59: #{lenet_forward.1} parent=11 // pred_region
          _
        $region60: #{lenet_forward.1} parent=11 // pred_fallthru
          _
        // Predicated region
        $region61: #{lenet_forward.1} parent=11 // pred_check
          %p509 = pneg %p331
        $region62: #{lenet_forward.1} parent=11 // pred_check_branch
          %511 = sbr.rel (%p509) target = $region64
        $region63: #{lenet_forward.1} parent=11 // pred_region
          _
        $region64: #{lenet_forward.1} parent=11 // pred_fallthru
          _
        // Predicated region
        $region65: #{lenet_forward.1} parent=11 // pred_check
          %p512 = pneg %p352
        $region66: #{lenet_forward.1} parent=11 // pred_check_branch
          %514 = sbr.rel (%p512) target = $region68
        $region67: #{lenet_forward.1} parent=11 // pred_region
          _
        $region68: #{lenet_forward.1} parent=11 // pred_fallthru
          _
        // Predicated region
        $region69: #{lenet_forward.1} parent=11 // pred_check
          %p515 = pneg %p373
        $region70: #{lenet_forward.1} parent=11 // pred_check_branch
          %517 = sbr.rel (%p515) target = $region72
        $region71: #{lenet_forward.1} parent=11 // pred_region
          _
        $region72: #{lenet_forward.1} parent=11 // pred_fallthru
          _
      $region12: #{lenet_forward.1} parent=5 // pred_fallthru
        _
      %p518 = scmp.lt.s32.totalorder %s32, 2
      // Predicated region
      $region73: #{lenet_forward.1} parent=5 // pred_check
        %p519 = pneg %p518
      $region74: #{lenet_forward.1} parent=5 // pred_check_branch
        %521 = sbr.rel (%p519) target = $region76
      $region75: #{lenet_forward.1} parent=5 // pred_region
        // Predicated region
        $region77: #{lenet_forward.1} parent=75 // pred_check
          %p522 = pneg %p52
        $region78: #{lenet_forward.1} parent=75 // pred_check_branch
          %524 = sbr.rel (%p522) target = $region80
        $region79: #{lenet_forward.1} parent=75 // pred_region
          %p525 = scmp.lt.s32.totalorder %s32, 1
          %s526 = scalar_select %p525, %s32, 1
          %s527 = smul.addr %s526, 4
          %s528 = smul.addr %s527, 8
          %s529 = scalar_lea.vmem %s0, %s528
        $region80: #{lenet_forward.1} parent=75 // pred_fallthru
          _
      $region76: #{lenet_forward.1} parent=5 // pred_fallthru
        _
      %p530 = scmp.le.s32.totalorder 1, %s32
      %p531 = scmp.lt.s32.totalorder %s32, 3
      %p532 = pnand %p530, %p531
      %p533 = pneg %p532
      // Predicated region
      $region81: #{lenet_forward.1} parent=5 // pred_check
        _
      $region82: #{lenet_forward.1} parent=5 // pred_check_branch
        %535 = sbr.rel (%p532) target = $region84
      $region83: #{lenet_forward.1} parent=5 // pred_region
        %s536 = ssub.s32 %s32, 1
        // Predicated region
        $region85: #{lenet_forward.1} parent=83 // pred_check
          %p537 = pneg %p79
        $region86: #{lenet_forward.1} parent=83 // pred_check_branch
          %539 = sbr.rel (%p537) target = $region88
        $region87: #{lenet_forward.1} parent=83 // pred_region
          %541 = dma.done [#allocation3], 5120
        $region88: #{lenet_forward.1} parent=83 // pred_fallthru
          _
        // Predicated region
        $region89: #{lenet_forward.1} parent=83 // pred_check
          %p542 = pneg %p121
        $region90: #{lenet_forward.1} parent=83 // pred_check_branch
          %544 = sbr.rel (%p542) target = $region92
        $region91: #{lenet_forward.1} parent=83 // pred_region
          %546 = dma.done [#allocation6], 5760
        $region92: #{lenet_forward.1} parent=83 // pred_fallthru
          _
        // Predicated region
        $region93: #{lenet_forward.1} parent=83 // pred_check
          %p547 = pneg %p205
        $region94: #{lenet_forward.1} parent=83 // pred_check_branch
          %549 = sbr.rel (%p547) target = $region96
        $region95: #{lenet_forward.1} parent=83 // pred_region
          %551 = dma.done [#allocation6], 4096
        $region96: #{lenet_forward.1} parent=83 // pred_fallthru
          _
        %p552 = scmp.lt.s32.totalorder %s37, 1
        %s553 = scalar_select %p552, %s37, 1
        %s554 = smul.addr %s553, 4
        %s555 = smul.addr %s554, 8
        %s556 = scalar_lea.vmem %s0, %s555
        %p557 = pneg %p58
        %p558 = pneg %p55
        %p559 = pneg %p79
        %p560 = pneg %p76
        %p561 = pneg %p100
        %p562 = pneg %p97
        %p563 = pneg %p121
        %p564 = pneg %p118
        %p565 = pneg %p142
        %p566 = pneg %p139
        %p567 = pneg %p163
        %p568 = pneg %p160
        %p569 = pneg %p184
        %p570 = pneg %p181
        %p571 = pneg %p205
        %p572 = pneg %p202
        %p573 = pneg %p226
        %p574 = pneg %p223
        %p575 = pneg %p247
        %p576 = pneg %p244
        %p577 = pneg %p268
        %p578 = pneg %p265
        %p579 = pneg %p289
        %p580 = pneg %p286
        %p581 = pneg %p310
        %p582 = pneg %p307
        %p583 = pneg %p331
        %p584 = pneg %p328
        %p585 = pneg %p352
        %p586 = pneg %p349
        %p587 = pneg %p373
        %p588 = pneg %p370
        %p589 = pneg %p399
        %p590 = pneg %p396
        %s591 = sand.u32 %s386, 1
        %s592 = scalar_lea.sflag [#allocation4], %s591
        %s593 = sand.u32 %s386, 1
        %s594 = scalar_lea.vmem [#allocation8], %s593
        %p595 = pneg %p425
        %p596 = pneg %p422
        %s597 = sand.u32 %s412, 1
        %s598 = scalar_lea.sflag [#allocation10], %s597
        %s599 = sand.u32 %s412, 1
        %s600 = scalar_lea.vmem [#allocation9], %s599
        %p601 = scmp.lt.s32.totalorder %s37, 1
        %s602 = scalar_select %p601, %s37, 1
        %s603 = smul.addr %s602, 4
        %s604 = smul.addr %s603, 8
        %s605 = scalar_lea.vmem %s0, %s604
        %v606 = vld [vmem:[%s605] sm:$0xff]
        %v607 = vld [vmem:[%s605 + $0x8] sm:$0xff]
        %v608 = vld [vmem:[%s605 + $0x10] sm:$0xff]
        %v609 = vld [vmem:[#allocation2] sm:$0xff]
        %v610 = vld [vmem:[#allocation2 + $0x8] sm:$0xff]
        %v611 = vld [vmem:[#allocation2 + $0x10] sm:$0xff]
        %v612 = vld [vmem:[#allocation2 + $0x18] sm:$0xff]
        %v613 = vld [vmem:[#allocation2 + $0x20] sm:$0xff]
        %v614 = vld [vmem:[#allocation2 + $0x28] sm:$0xff]
        %v615 = vld [vmem:[#allocation2 + $0x30] sm:$0xf]
        %v616 = vld [vmem:[#allocation2 + $0x38] sm:$0xf]
        %v617 = vld [vmem:[%s605 + $0x1] sm:$0xff]
        %v618 = vld [vmem:[%s605 + $0x9] sm:$0xff]
        %v619 = vld [vmem:[%s605 + $0x11] sm:$0xff]
        %s620 = scalar_lea.vmem [#allocation2], 64
        %v621 = vld [vmem:[%s620] sm:$0xff]
        %v622 = vld [vmem:[%s620 + $0x8] sm:$0xff]
        %v623 = vld [vmem:[%s620 + $0x10] sm:$0xff]
        %v624 = vld [vmem:[%s620 + $0x18] sm:$0xff]
        %v625 = vld [vmem:[%s620 + $0x20] sm:$0xff]
        %v626 = vld [vmem:[%s620 + $0x28] sm:$0xff]
        %v627 = vld [vmem:[%s620 + $0x30] sm:$0xf]
        %v628 = vld [vmem:[%s620 + $0x38] sm:$0xf]
        %vm629 = vcmask 228352
        %v631 = vsel %vm629, %v617, 0
        %v634 = vsel %vm629, %v618, 0
        %v637 = vsel %vm629, %v619, 0
        %vm639 = vcmask 1043456
        %v641 = vsel %vm639, %v627, 0
        %v644 = vsel %vm639, %v628, 0
        %646 = vmatpush.msra.mxu0 0.0
        %647 = vmatpush.msra.mxu0 0.0
        %648 = vmatpush.msra.mxu0 0.0
        %649 = vmatpush.msra.mxu0 0.0
        %650 = vmatpush.msra.mxu0 0.0
        %651 = vmatpush.msra.mxu0 0.0
        %652 = vmatpush.msra.mxu0 0.0
        %653 = vmatpush.msra.mxu0 0.0
        %654 = vmatpush.msra.mxu0 0.0
        %655 = vmatpush.msra.mxu0 0.0
        %656 = vmatpush.msra.mxu0 0.0
        %657 = vmatpush.msra.mxu0 0.0
        %658 = vmatpush.msra.mxu0 %v641
        %659 = vmatpush.msra.mxu0 %v625
        %660 = vmatpush.msra.mxu0 %v623
        %661 = vmatpush.msra.mxu0 %v621
        %662 = vmatmul.f32.gmra.mxu0 %v631
        %v663 = vpop.f32.mrf.mxu0
        %v664 = vadd.f32 0.0, %v663
        %665 = vmatmul.f32.gmra.mxu0 %v634
        %v666 = vpop.f32.mrf.mxu0
        %v667 = vadd.f32 0.0, %v666
        %668 = vmatmul.f32.gmra.mxu0 %v637
        %v669 = vpop.f32.mrf.mxu0
        %v670 = vadd.f32 0.0, %v669
        %671 = vdwg.mxu0
        %672 = vmatpush.msra.mxu0 0.0
        %673 = vmatpush.msra.mxu0 0.0
        %674 = vmatpush.msra.mxu0 0.0
        %675 = vmatpush.msra.mxu0 0.0
        %676 = vmatpush.msra.mxu0 0.0
        %677 = vmatpush.msra.mxu0 0.0
        %678 = vmatpush.msra.mxu0 0.0
        %679 = vmatpush.msra.mxu0 0.0
        %680 = vmatpush.msra.mxu0 0.0
        %681 = vmatpush.msra.mxu0 0.0
        %682 = vmatpush.msra.mxu0 0.0
        %683 = vmatpush.msra.mxu0 0.0
        %684 = vmatpush.msra.mxu0 %v644
        %685 = vmatpush.msra.mxu0 %v626
        %686 = vmatpush.msra.mxu0 %v624
        %687 = vmatpush.msra.mxu0 %v622
        %688 = vmatmul.f32.gmra.mxu0 %v631
        %v689 = vpop.f32.mrf.mxu0
        %v690 = vadd.f32 0.0, %v689
        %691 = vmatmul.f32.gmra.mxu0 %v634
        %v692 = vpop.f32.mrf.mxu0
        %v693 = vadd.f32 0.0, %v692
        %694 = vmatmul.f32.gmra.mxu0 %v637
        %v695 = vpop.f32.mrf.mxu0
        %v696 = vadd.f32 0.0, %v695
        %697 = vdwg.mxu0
        %v699 = vsel %vm629, %v606, 0
        %v702 = vsel %vm629, %v607, 0
        %v705 = vsel %vm629, %v608, 0
        %v708 = vsel %vm639, %v615, 0
        %v711 = vsel %vm639, %v616, 0
        %713 = vmatpush.msra.mxu0 0.0
        %714 = vmatpush.msra.mxu0 0.0
        %715 = vmatpush.msra.mxu0 0.0
        %716 = vmatpush.msra.mxu0 0.0
        %717 = vmatpush.msra.mxu0 0.0
        %718 = vmatpush.msra.mxu0 0.0
        %719 = vmatpush.msra.mxu0 0.0
        %720 = vmatpush.msra.mxu0 0.0
        %721 = vmatpush.msra.mxu0 0.0
        %722 = vmatpush.msra.mxu0 0.0
        %723 = vmatpush.msra.mxu0 0.0
        %724 = vmatpush.msra.mxu0 0.0
        %725 = vmatpush.msra.mxu0 %v708
        %726 = vmatpush.msra.mxu0 %v613
        %727 = vmatpush.msra.mxu0 %v611
        %728 = vmatpush.msra.mxu0 %v609
        %729 = vmatmul.f32.gmra.mxu0 %v699
        %v730 = vpop.f32.mrf.mxu0
        %v731 = vadd.f32 %v664, %v730
        %732 = vmatmul.f32.gmra.mxu0 %v702
        %v733 = vpop.f32.mrf.mxu0
        %v734 = vadd.f32 %v667, %v733
        %735 = vmatmul.f32.gmra.mxu0 %v705
        %v736 = vpop.f32.mrf.mxu0
        %v737 = vadd.f32 %v670, %v736
        %738 = vdwg.mxu0
        %739 = vmatpush.msra.mxu0 0.0
        %740 = vmatpush.msra.mxu0 0.0
        %741 = vmatpush.msra.mxu0 0.0
        %742 = vmatpush.msra.mxu0 0.0
        %743 = vmatpush.msra.mxu0 0.0
        %744 = vmatpush.msra.mxu0 0.0
        %745 = vmatpush.msra.mxu0 0.0
        %746 = vmatpush.msra.mxu0 0.0
        %747 = vmatpush.msra.mxu0 0.0
        %748 = vmatpush.msra.mxu0 0.0
        %749 = vmatpush.msra.mxu0 0.0
        %750 = vmatpush.msra.mxu0 0.0
        %751 = vmatpush.msra.mxu0 %v711
        %752 = vmatpush.msra.mxu0 %v614
        %753 = vmatpush.msra.mxu0 %v612
        %754 = vmatpush.msra.mxu0 %v610
        %755 = vmatmul.f32.gmra.mxu0 %v699
        %v756 = vpop.f32.mrf.mxu0
        %v757 = vadd.f32 %v690, %v756
        %758 = vmatmul.f32.gmra.mxu0 %v702
        %v759 = vpop.f32.mrf.mxu0
        %v760 = vadd.f32 %v693, %v759
        %761 = vmatmul.f32.gmra.mxu0 %v705
        %v762 = vpop.f32.mrf.mxu0
        %v763 = vadd.f32 %v696, %v762
        %764 = vdwg.mxu0
        %v765 = vld [vmem:[%s605 + $0x2] sm:$0xff]
        %v766 = vld [vmem:[%s605 + $0xa] sm:$0xff]
        %v767 = vld [vmem:[%s605 + $0x12] sm:$0xff]
        %s768 = scalar_lea.vmem [#allocation2], 128
        %v769 = vld [vmem:[%s768] sm:$0xff]
        %v770 = vld [vmem:[%s768 + $0x8] sm:$0xff]
        %v771 = vld [vmem:[%s768 + $0x10] sm:$0xff]
        %v772 = vld [vmem:[%s768 + $0x18] sm:$0xff]
        %v773 = vld [vmem:[%s768 + $0x20] sm:$0xff]
        %v774 = vld [vmem:[%s768 + $0x28] sm:$0xff]
        %v775 = vld [vmem:[%s768 + $0x30] sm:$0xf]
        %v776 = vld [vmem:[%s768 + $0x38] sm:$0xf]
        %v778 = vsel %vm629, %v765, 0
        %v781 = vsel %vm629, %v766, 0
        %v784 = vsel %vm629, %v767, 0
        %v787 = vsel %vm639, %v775, 0
        %v790 = vsel %vm639, %v776, 0
        %792 = vmatpush.msra.mxu0 0.0
        %793 = vmatpush.msra.mxu0 0.0
        %794 = vmatpush.msra.mxu0 0.0
        %795 = vmatpush.msra.mxu0 0.0
        %796 = vmatpush.msra.mxu0 0.0
        %797 = vmatpush.msra.mxu0 0.0
        %798 = vmatpush.msra.mxu0 0.0
        %799 = vmatpush.msra.mxu0 0.0
        %800 = vmatpush.msra.mxu0 0.0
        %801 = vmatpush.msra.mxu0 0.0
        %802 = vmatpush.msra.mxu0 0.0
        %803 = vmatpush.msra.mxu0 0.0
        %804 = vmatpush.msra.mxu0 %v787
        %805 = vmatpush.msra.mxu0 %v773
        %806 = vmatpush.msra.mxu0 %v771
        %807 = vmatpush.msra.mxu0 %v769
        %808 = vmatmul.f32.gmra.mxu0 %v778
        %v809 = vpop.f32.mrf.mxu0
        %v810 = vadd.f32 0.0, %v809
        %811 = vmatmul.f32.gmra.mxu0 %v781
        %v812 = vpop.f32.mrf.mxu0
        %v813 = vadd.f32 0.0, %v812
        %814 = vmatmul.f32.gmra.mxu0 %v784
        %v815 = vpop.f32.mrf.mxu0
        %v816 = vadd.f32 0.0, %v815
        %817 = vdwg.mxu0
        %818 = vmatpush.msra.mxu0 0.0
        %819 = vmatpush.msra.mxu0 0.0
        %820 = vmatpush.msra.mxu0 0.0
        %821 = vmatpush.msra.mxu0 0.0
        %822 = vmatpush.msra.mxu0 0.0
        %823 = vmatpush.msra.mxu0 0.0
        %824 = vmatpush.msra.mxu0 0.0
        %825 = vmatpush.msra.mxu0 0.0
        %826 = vmatpush.msra.mxu0 0.0
        %827 = vmatpush.msra.mxu0 0.0
        %828 = vmatpush.msra.mxu0 0.0
        %829 = vmatpush.msra.mxu0 0.0
        %830 = vmatpush.msra.mxu0 %v790
        %831 = vmatpush.msra.mxu0 %v774
        %832 = vmatpush.msra.mxu0 %v772
        %833 = vmatpush.msra.mxu0 %v770
        %834 = vmatmul.f32.gmra.mxu0 %v778
        %v835 = vpop.f32.mrf.mxu0
        %v836 = vadd.f32 0.0, %v835
        %837 = vmatmul.f32.gmra.mxu0 %v781
        %v838 = vpop.f32.mrf.mxu0
        %v839 = vadd.f32 0.0, %v838
        %840 = vmatmul.f32.gmra.mxu0 %v784
        %v841 = vpop.f32.mrf.mxu0
        %v842 = vadd.f32 0.0, %v841
        %843 = vdwg.mxu0
        %v844 = vadd.f32 %v731, %v810
        %v845 = vadd.f32 %v757, %v836
        %v846 = vadd.f32 %v734, %v813
        %v847 = vadd.f32 %v760, %v839
        %v848 = vadd.f32 %v737, %v816
        %v849 = vadd.f32 %v763, %v842
        %v850 = vld [vmem:[%s605 + $0x3] sm:$0xff]
        %v851 = vld [vmem:[%s605 + $0xb] sm:$0xff]
        %v852 = vld [vmem:[%s605 + $0x13] sm:$0xff]
        %s853 = scalar_lea.vmem [#allocation2], 192
        %v854 = vld [vmem:[%s853] sm:$0xff]
        %v855 = vld [vmem:[%s853 + $0x8] sm:$0xff]
        %v856 = vld [vmem:[%s853 + $0x10] sm:$0xff]
        %v857 = vld [vmem:[%s853 + $0x18] sm:$0xff]
        %v858 = vld [vmem:[%s853 + $0x20] sm:$0xff]
        %v859 = vld [vmem:[%s853 + $0x28] sm:$0xff]
        %v860 = vld [vmem:[%s853 + $0x30] sm:$0xf]
        %v861 = vld [vmem:[%s853 + $0x38] sm:$0xf]
        %v863 = vsel %vm629, %v850, 0
        %v866 = vsel %vm629, %v851, 0
        %v869 = vsel %vm629, %v852, 0
        %v872 = vsel %vm639, %v860, 0
        %v875 = vsel %vm639, %v861, 0
        %877 = vmatpush.msra.mxu0 0.0
        %878 = vmatpush.msra.mxu0 0.0
        %879 = vmatpush.msra.mxu0 0.0
        %880 = vmatpush.msra.mxu0 0.0
        %881 = vmatpush.msra.mxu0 0.0
        %882 = vmatpush.msra.mxu0 0.0
        %883 = vmatpush.msra.mxu0 0.0
        %884 = vmatpush.msra.mxu0 0.0
        %885 = vmatpush.msra.mxu0 0.0
        %886 = vmatpush.msra.mxu0 0.0
        %887 = vmatpush.msra.mxu0 0.0
        %888 = vmatpush.msra.mxu0 0.0
        %889 = vmatpush.msra.mxu0 %v872
        %890 = vmatpush.msra.mxu0 %v858
        %891 = vmatpush.msra.mxu0 %v856
        %892 = vmatpush.msra.mxu0 %v854
        %893 = vmatmul.f32.gmra.mxu0 %v863
        %v894 = vpop.f32.mrf.mxu0
        %v895 = vadd.f32 0.0, %v894
        %896 = vmatmul.f32.gmra.mxu0 %v866
        %v897 = vpop.f32.mrf.mxu0
        %v898 = vadd.f32 0.0, %v897
        %899 = vmatmul.f32.gmra.mxu0 %v869
        %v900 = vpop.f32.mrf.mxu0
        %v901 = vadd.f32 0.0, %v900
        %902 = vdwg.mxu0
        %903 = vmatpush.msra.mxu0 0.0
        %904 = vmatpush.msra.mxu0 0.0
        %905 = vmatpush.msra.mxu0 0.0
        %906 = vmatpush.msra.mxu0 0.0
        %907 = vmatpush.msra.mxu0 0.0
        %908 = vmatpush.msra.mxu0 0.0
        %909 = vmatpush.msra.mxu0 0.0
        %910 = vmatpush.msra.mxu0 0.0
        %911 = vmatpush.msra.mxu0 0.0
        %912 = vmatpush.msra.mxu0 0.0
        %913 = vmatpush.msra.mxu0 0.0
        %914 = vmatpush.msra.mxu0 0.0
        %915 = vmatpush.msra.mxu0 %v875
        %916 = vmatpush.msra.mxu0 %v859
        %917 = vmatpush.msra.mxu0 %v857
        %918 = vmatpush.msra.mxu0 %v855
        %919 = vmatmul.f32.gmra.mxu0 %v863
        %v920 = vpop.f32.mrf.mxu0
        %v921 = vadd.f32 0.0, %v920
        %922 = vmatmul.f32.gmra.mxu0 %v866
        %v923 = vpop.f32.mrf.mxu0
        %v924 = vadd.f32 0.0, %v923
        %925 = vmatmul.f32.gmra.mxu0 %v869
        %v926 = vpop.f32.mrf.mxu0
        %v927 = vadd.f32 0.0, %v926
        %928 = vdwg.mxu0
        %v929 = vadd.f32 %v844, %v895
        %v930 = vadd.f32 %v845, %v921
        %v931 = vadd.f32 %v846, %v898
        %v932 = vadd.f32 %v847, %v924
        %v933 = vadd.f32 %v848, %v901
        %v934 = vadd.f32 %v849, %v927
        %v935 = vld [vmem:[%s605 + $0x4] sm:$0xff]
        %v936 = vld [vmem:[%s605 + $0xc] sm:$0xff]
        %v937 = vld [vmem:[%s605 + $0x14] sm:$0xff]
        %s938 = scalar_lea.vmem [#allocation2], 256
        %v939 = vld [vmem:[%s938] sm:$0xff]
        %v940 = vld [vmem:[%s938 + $0x8] sm:$0xff]
        %v941 = vld [vmem:[%s938 + $0x10] sm:$0xff]
        %v942 = vld [vmem:[%s938 + $0x18] sm:$0xff]
        %v943 = vld [vmem:[%s938 + $0x20] sm:$0xff]
        %v944 = vld [vmem:[%s938 + $0x28] sm:$0xff]
        %v945 = vld [vmem:[%s938 + $0x30] sm:$0xf]
        %v946 = vld [vmem:[%s938 + $0x38] sm:$0xf]
        %v948 = vsel %vm629, %v935, 0
        %v951 = vsel %vm629, %v936, 0
        %v954 = vsel %vm629, %v937, 0
        %v957 = vsel %vm639, %v945, 0
        %v960 = vsel %vm639, %v946, 0
        %962 = vmatpush.msra.mxu0 0.0
        %963 = vmatpush.msra.mxu0 0.0
        %964 = vmatpush.msra.mxu0 0.0
        %965 = vmatpush.msra.mxu0 0.0
        %966 = vmatpush.msra.mxu0 0.0
        %967 = vmatpush.msra.mxu0 0.0
        %968 = vmatpush.msra.mxu0 0.0
        %969 = vmatpush.msra.mxu0 0.0
        %970 = vmatpush.msra.mxu0 0.0
        %971 = vmatpush.msra.mxu0 0.0
        %972 = vmatpush.msra.mxu0 0.0
        %973 = vmatpush.msra.mxu0 0.0
        %974 = vmatpush.msra.mxu0 %v957
        %975 = vmatpush.msra.mxu0 %v943
        %976 = vmatpush.msra.mxu0 %v941
        %977 = vmatpush.msra.mxu0 %v939
        %978 = vmatmul.f32.gmra.mxu0 %v948
        %v979 = vpop.f32.mrf.mxu0
        %v980 = vadd.f32 0.0, %v979
        %981 = vmatmul.f32.gmra.mxu0 %v951
        %v982 = vpop.f32.mrf.mxu0
        %v983 = vadd.f32 0.0, %v982
        %984 = vmatmul.f32.gmra.mxu0 %v954
        %v985 = vpop.f32.mrf.mxu0
        %v986 = vadd.f32 0.0, %v985
        %987 = vdwg.mxu0
        %988 = vmatpush.msra.mxu0 0.0
        %989 = vmatpush.msra.mxu0 0.0
        %990 = vmatpush.msra.mxu0 0.0
        %991 = vmatpush.msra.mxu0 0.0
        %992 = vmatpush.msra.mxu0 0.0
        %993 = vmatpush.msra.mxu0 0.0
        %994 = vmatpush.msra.mxu0 0.0
        %995 = vmatpush.msra.mxu0 0.0
        %996 = vmatpush.msra.mxu0 0.0
        %997 = vmatpush.msra.mxu0 0.0
        %998 = vmatpush.msra.mxu0 0.0
        %999 = vmatpush.msra.mxu0 0.0
        %1000 = vmatpush.msra.mxu0 %v960
        %1001 = vmatpush.msra.mxu0 %v944
        %1002 = vmatpush.msra.mxu0 %v942
        %1003 = vmatpush.msra.mxu0 %v940
        %1004 = vmatmul.f32.gmra.mxu0 %v948
        %v1005 = vpop.f32.mrf.mxu0
        %v1006 = vadd.f32 0.0, %v1005
        %1007 = vmatmul.f32.gmra.mxu0 %v951
        %v1008 = vpop.f32.mrf.mxu0
        %v1009 = vadd.f32 0.0, %v1008
        %1010 = vmatmul.f32.gmra.mxu0 %v954
        %v1011 = vpop.f32.mrf.mxu0
        %v1012 = vadd.f32 0.0, %v1011
        %1013 = vdwg.mxu0
        %v1014 = vadd.f32 %v929, %v980
        %v1015 = vadd.f32 %v930, %v1006
        %v1016 = vadd.f32 %v931, %v983
        %v1017 = vadd.f32 %v932, %v1009
        %v1018 = vadd.f32 %v933, %v986
        %v1019 = vadd.f32 %v934, %v1012
        %v1020 = vld [vmem:[%s2] sm:$0x3]
        %v1022 = vperm.slane %v1020, 0
        %v1023 = vperm.slane %v1020, 1
        %v1026 = vadd.f32 %v1014, %v1022
        %v1027 = vadd.f32 %v1015, %v1023
        %v1028 = vadd.f32 %v1016, %v1022
        %v1029 = vadd.f32 %v1017, %v1023
        %v1030 = vadd.f32 %v1018, %v1022
        %v1031 = vadd.f32 %v1019, %v1023
        %v1032 = vld [vmem:[%s15] sm:$0x1]
        %vm1033 = vcmp.ge.f32.partialorder %v1026, 0.0
        %vm1034 = vcmp.ge.f32.partialorder %v1027, 0.0
        %vm1035 = vcmp.ge.f32.partialorder %v1028, 0.0
        %vm1036 = vcmp.ge.f32.partialorder %v1029, 0.0
        %vm1037 = vcmp.ge.f32.partialorder %v1030, 0.0
        %vm1038 = vcmp.ge.f32.partialorder %v1031, 0.0
        %v1040 = vperm.slane %v1032, 0
        %1041 = vset.pattern.permute.xlu0 0
        %1042 = vperm.xlu0 %1041, %v1040
        %v1043 = vpop.permute.xlu0 %1042
        %v1045 = vmul.f32 %v1043, %v1026
        %v1046 = vmul.f32 %v1043, %v1027
        %v1047 = vmul.f32 %v1043, %v1028
        %v1048 = vmul.f32 %v1043, %v1029
        %v1049 = vmul.f32 %v1043, %v1030
        %v1050 = vmul.f32 %v1043, %v1031
        %v1051 = vsel %vm1033, %v1026, %v1045
        %v1052 = vsel %vm1034, %v1027, %v1046
        %v1053 = vsel %vm1035, %v1028, %v1047
        %v1054 = vsel %vm1036, %v1029, %v1048
        %v1055 = vsel %vm1037, %v1030, %v1049
        %v1056 = vsel %vm1038, %v1031, %v1050
        %v1057 = vmax.f32 %v1051, %v1052
        %v1058 = vmax.f32 %v1053, %v1054
        %v1059 = vmax.f32 %v1055, %v1056
        %vm1063 = vcmask 1046528
        %v1064 = vrot.slane %v1057, 1
        %v1065 = vrot.slane %v1058, 1
        %v1066 = vsel %vm1063, %v1064, %v1065
        %v1067 = vrot.slane %v1059, 1
        %v1068 = vsel %vm1063, %v1065, %v1067
        %v1072 = vmax.f32 %v1057, %v1066
        %v1073 = vmax.f32 %v1058, %v1068
        %v1074 = vmax.f32 %v1059, %v1067
        %v1075 = vld [vmem:[%s5] sm:$0xff]
        %v1076 = vld [vmem:[%s5 + $0x8] sm:$0xf]
        %vm1077 = vcmask 187392
        %v1079 = vsel %vm1077, %v1075, 0
        %v1082 = vsel %vm1077, %v1076, 0
        %v1085 = vsel %vm1063, %v1074, 0
        %1087 = vmatpush.msra.mxu0 0.0
        %1088 = vmatpush.msra.mxu0 0.0
        %1089 = vmatpush.msra.mxu0 0.0
        %1090 = vmatpush.msra.mxu0 0.0
        %1091 = vmatpush.msra.mxu0 0.0
        %1092 = vmatpush.msra.mxu0 0.0
        %1093 = vmatpush.msra.mxu0 0.0
        %1094 = vmatpush.msra.mxu0 0.0
        %1095 = vmatpush.msra.mxu0 0.0
        %1096 = vmatpush.msra.mxu0 0.0
        %1097 = vmatpush.msra.mxu0 0.0
        %1098 = vmatpush.msra.mxu0 0.0
        %1099 = vmatpush.msra.mxu0 0.0
        %1100 = vmatpush.msra.mxu0 %v1085
        %1101 = vmatpush.msra.mxu0 %v1073
        %1102 = vmatpush.msra.mxu0 %v1072
        %1103 = vmatmul.f32.gmra.mxu0 %v1079
        %v1104 = vpop.f32.mrf.mxu0
        %v1105 = vadd.f32 0.0, %v1104
        %1106 = vmatmul.f32.gmra.mxu0 %v1082
        %v1107 = vpop.f32.mrf.mxu0
        %v1108 = vadd.f32 0.0, %v1107
        %1109 = vdwg.mxu0
        %v1110 = vld [vmem:[#allocation5] sm:$0xff]
        %v1111 = vld [vmem:[#allocation5 + $0x8] sm:$0xff]
        %v1112 = vld [vmem:[#allocation5 + $0x10] sm:$0xff]
        %v1113 = vld [vmem:[#allocation5 + $0x18] sm:$0xff]
        %v1114 = vld [vmem:[#allocation5 + $0x20] sm:$0xff]
        %v1115 = vld [vmem:[#allocation5 + $0x28] sm:$0xff]
        %v1116 = vld [vmem:[#allocation5 + $0x30] sm:$0xff]
        %v1117 = vld [vmem:[#allocation5 + $0x38] sm:$0xff]
        %v1118 = vld [vmem:[#allocation5 + $0x40] sm:$0xff]
        %s1119 = scalar_lea.vmem [#allocation5], 72
        %v1120 = vld [vmem:[%s1119] sm:$0xff]
        %v1121 = vld [vmem:[%s1119 + $0x8] sm:$0xff]
        %v1122 = vld [vmem:[%s1119 + $0x10] sm:$0xff]
        %v1123 = vld [vmem:[%s1119 + $0x18] sm:$0xff]
        %v1124 = vld [vmem:[%s1119 + $0x20] sm:$0xff]
        %v1125 = vld [vmem:[%s1119 + $0x28] sm:$0xff]
        %v1126 = vld [vmem:[%s1119 + $0x30] sm:$0xff]
        %v1127 = vld [vmem:[%s1119 + $0x38] sm:$0xff]
        %v1128 = vld [vmem:[%s1119 + $0x40] sm:$0xff]
        %v1131 = vrot.slane %v1105, 1
        %v1132 = vrot.slane %v1108, 1
        %v1133 = vsel %vm1063, %v1131, %v1132
        %vm1134 = vcmask 588800
        %v1135 = vsel %vm1134, %v1133, 0
        %1137 = vmatpush.msra.mxu0 0.0
        %1138 = vmatpush.msra.mxu0 0.0
        %1139 = vmatpush.msra.mxu0 0.0
        %1140 = vmatpush.msra.mxu0 0.0
        %1141 = vmatpush.msra.mxu0 0.0
        %1142 = vmatpush.msra.mxu0 0.0
        %1143 = vmatpush.msra.mxu0 0.0
        %1144 = vmatpush.msra.mxu0 %v1128
        %1145 = vmatpush.msra.mxu0 %v1127
        %1146 = vmatpush.msra.mxu0 %v1126
        %1147 = vmatpush.msra.mxu0 %v1125
        %1148 = vmatpush.msra.mxu0 %v1124
        %1149 = vmatpush.msra.mxu0 %v1123
        %1150 = vmatpush.msra.mxu0 %v1122
        %1151 = vmatpush.msra.mxu0 %v1121
        %1152 = vmatpush.msra.mxu0 %v1120
        %1153 = vmatmul.f32.gmra.mxu0 %v1135
        %v1154 = vpop.f32.mrf.mxu0
        %v1155 = vadd.f32 0.0, %v1154
        %1156 = vdwg.mxu0
        %v1157 = vsel %vm1134, %v1105, 0
        %1159 = vmatpush.msra.mxu0 0.0
        %1160 = vmatpush.msra.mxu0 0.0
        %1161 = vmatpush.msra.mxu0 0.0
        %1162 = vmatpush.msra.mxu0 0.0
        %1163 = vmatpush.msra.mxu0 0.0
        %1164 = vmatpush.msra.mxu0 0.0
        %1165 = vmatpush.msra.mxu0 0.0
        %1166 = vmatpush.msra.mxu0 %v1118
        %1167 = vmatpush.msra.mxu0 %v1117
        %1168 = vmatpush.msra.mxu0 %v1116
        %1169 = vmatpush.msra.mxu0 %v1115
        %1170 = vmatpush.msra.mxu0 %v1114
        %1171 = vmatpush.msra.mxu0 %v1113
        %1172 = vmatpush.msra.mxu0 %v1112
        %1173 = vmatpush.msra.mxu0 %v1111
        %1174 = vmatpush.msra.mxu0 %v1110
        %1175 = vmatmul.f32.gmra.mxu0 %v1157
        %v1176 = vpop.f32.mrf.mxu0
        %v1177 = vadd.f32 %v1155, %v1176
        %1178 = vdwg.mxu0
        %s1179 = scalar_lea.vmem [#allocation5], 144
        %v1180 = vld [vmem:[%s1179] sm:$0xff]
        %v1181 = vld [vmem:[%s1179 + $0x8] sm:$0xff]
        %v1182 = vld [vmem:[%s1179 + $0x10] sm:$0xff]
        %v1183 = vld [vmem:[%s1179 + $0x18] sm:$0xff]
        %v1184 = vld [vmem:[%s1179 + $0x20] sm:$0xff]
        %v1185 = vld [vmem:[%s1179 + $0x28] sm:$0xff]
        %v1186 = vld [vmem:[%s1179 + $0x30] sm:$0xff]
        %v1187 = vld [vmem:[%s1179 + $0x38] sm:$0xff]
        %v1188 = vld [vmem:[%s1179 + $0x40] sm:$0xff]
        %vm1189 = vcmask 1045504
        %v1190 = vrot.slane %v1105, 2
        %v1191 = vrot.slane %v1108, 2
        %v1192 = vsel %vm1189, %v1190, %v1191
        %v1193 = vsel %vm1134, %v1192, 0
        %1195 = vmatpush.msra.mxu0 0.0
        %1196 = vmatpush.msra.mxu0 0.0
        %1197 = vmatpush.msra.mxu0 0.0
        %1198 = vmatpush.msra.mxu0 0.0
        %1199 = vmatpush.msra.mxu0 0.0
        %1200 = vmatpush.msra.mxu0 0.0
        %1201 = vmatpush.msra.mxu0 0.0
        %1202 = vmatpush.msra.mxu0 %v1188
        %1203 = vmatpush.msra.mxu0 %v1187
        %1204 = vmatpush.msra.mxu0 %v1186
        %1205 = vmatpush.msra.mxu0 %v1185
        %1206 = vmatpush.msra.mxu0 %v1184
        %1207 = vmatpush.msra.mxu0 %v1183
        %1208 = vmatpush.msra.mxu0 %v1182
        %1209 = vmatpush.msra.mxu0 %v1181
        %1210 = vmatpush.msra.mxu0 %v1180
        %1211 = vmatmul.f32.gmra.mxu0 %v1193
        %v1212 = vpop.f32.mrf.mxu0
        %v1213 = vadd.f32 0.0, %v1212
        %1214 = vdwg.mxu0
        %v1215 = vadd.f32 %v1177, %v1213
        %s1216 = scalar_lea.vmem [#allocation5], 216
        %v1217 = vld [vmem:[%s1216] sm:$0xff]
        %v1218 = vld [vmem:[%s1216 + $0x8] sm:$0xff]
        %v1219 = vld [vmem:[%s1216 + $0x10] sm:$0xff]
        %v1220 = vld [vmem:[%s1216 + $0x18] sm:$0xff]
        %v1221 = vld [vmem:[%s1216 + $0x20] sm:$0xff]
        %v1222 = vld [vmem:[%s1216 + $0x28] sm:$0xff]
        %v1223 = vld [vmem:[%s1216 + $0x30] sm:$0xff]
        %v1224 = vld [vmem:[%s1216 + $0x38] sm:$0xff]
        %v1225 = vld [vmem:[%s1216 + $0x40] sm:$0xff]
        %vm1226 = vcmask 1044480
        %v1227 = vrot.slane %v1105, 3
        %v1228 = vrot.slane %v1108, 3
        %v1229 = vsel %vm1226, %v1227, %v1228
        %v1230 = vsel %vm1134, %v1229, 0
        %1232 = vmatpush.msra.mxu0 0.0
        %1233 = vmatpush.msra.mxu0 0.0
        %1234 = vmatpush.msra.mxu0 0.0
        %1235 = vmatpush.msra.mxu0 0.0
        %1236 = vmatpush.msra.mxu0 0.0
        %1237 = vmatpush.msra.mxu0 0.0
        %1238 = vmatpush.msra.mxu0 0.0
        %1239 = vmatpush.msra.mxu0 %v1225
        %1240 = vmatpush.msra.mxu0 %v1224
        %1241 = vmatpush.msra.mxu0 %v1223
        %1242 = vmatpush.msra.mxu0 %v1222
        %1243 = vmatpush.msra.mxu0 %v1221
        %1244 = vmatpush.msra.mxu0 %v1220
        %1245 = vmatpush.msra.mxu0 %v1219
        %1246 = vmatpush.msra.mxu0 %v1218
        %1247 = vmatpush.msra.mxu0 %v1217
        %1248 = vmatmul.f32.gmra.mxu0 %v1230
        %v1249 = vpop.f32.mrf.mxu0
        %v1250 = vadd.f32 0.0, %v1249
        %1251 = vdwg.mxu0
        %v1252 = vadd.f32 %v1215, %v1250
        %s1253 = scalar_lea.vmem [#allocation5], 288
        %v1254 = vld [vmem:[%s1253] sm:$0xff]
        %v1255 = vld [vmem:[%s1253 + $0x8] sm:$0xff]
        %v1256 = vld [vmem:[%s1253 + $0x10] sm:$0xff]
        %v1257 = vld [vmem:[%s1253 + $0x18] sm:$0xff]
        %v1258 = vld [vmem:[%s1253 + $0x20] sm:$0xff]
        %v1259 = vld [vmem:[%s1253 + $0x28] sm:$0xff]
        %v1260 = vld [vmem:[%s1253 + $0x30] sm:$0xff]
        %v1261 = vld [vmem:[%s1253 + $0x38] sm:$0xff]
        %v1262 = vld [vmem:[%s1253 + $0x40] sm:$0xff]
        %v1263 = vrot.slane %v1105, 4
        %v1264 = vrot.slane %v1108, 4
        %v1265 = vsel %vm639, %v1263, %v1264
        %v1266 = vsel %vm1134, %v1265, 0
        %1268 = vmatpush.msra.mxu0 0.0
        %1269 = vmatpush.msra.mxu0 0.0
        %1270 = vmatpush.msra.mxu0 0.0
        %1271 = vmatpush.msra.mxu0 0.0
        %1272 = vmatpush.msra.mxu0 0.0
        %1273 = vmatpush.msra.mxu0 0.0
        %1274 = vmatpush.msra.mxu0 0.0
        %1275 = vmatpush.msra.mxu0 %v1262
        %1276 = vmatpush.msra.mxu0 %v1261
        %1277 = vmatpush.msra.mxu0 %v1260
        %1278 = vmatpush.msra.mxu0 %v1259
        %1279 = vmatpush.msra.mxu0 %v1258
        %1280 = vmatpush.msra.mxu0 %v1257
        %1281 = vmatpush.msra.mxu0 %v1256
        %1282 = vmatpush.msra.mxu0 %v1255
        %1283 = vmatpush.msra.mxu0 %v1254
        %1284 = vmatmul.f32.gmra.mxu0 %v1266
        %v1285 = vpop.f32.mrf.mxu0
        %v1286 = vadd.f32 0.0, %v1285
        %1287 = vdwg.mxu0
        %v1288 = vadd.f32 %v1252, %v1286
        %v1289 = vld [vmem:[%s4] sm:$0x1]
        %v1291 = vperm.slane %v1289, 0
        %v1293 = vadd.f32 %v1288, %v1291
        %vm1294 = vcmp.ge.f32.partialorder %v1293, 0.0
        %1295 = vset.pattern.permute.xlu0 1
        %1296 = vperm.xlu0 %1295, %v1040
        %v1297 = vpop.permute.xlu0 %1296
        %v1299 = vmul.f32 %v1297, %v1293
        %v1300 = vsel %vm1294, %v1293, %v1299
        %1302 = vrot.lane.b32.xlu0 %v1300, 64
        %v1303 = vpop.permute.xlu0 %1302
        %v1305 = vmax.f32 %v1300, %v1303
        %v1307 = vrot.slane %v1305, 1
        %v1309 = vmax.f32 %v1305, %v1307
        %v1310 = vld [vmem:[%s6] sm:$0xf]
        %vm1311 = vcmask 56320
        %v1313 = vsel %vm1311, %v1310, 0
        %v1316 = vsel %vm1063, %v1309, 0
        %1318 = vmatpush.msra.mxu0 0.0
        %1319 = vmatpush.msra.mxu0 0.0
        %1320 = vmatpush.msra.mxu0 0.0
        %1321 = vmatpush.msra.mxu0 0.0
        %1322 = vmatpush.msra.mxu0 0.0
        %1323 = vmatpush.msra.mxu0 0.0
        %1324 = vmatpush.msra.mxu0 0.0
        %1325 = vmatpush.msra.mxu0 0.0
        %1326 = vmatpush.msra.mxu0 0.0
        %1327 = vmatpush.msra.mxu0 0.0
        %1328 = vmatpush.msra.mxu0 0.0
        %1329 = vmatpush.msra.mxu0 0.0
        %1330 = vmatpush.msra.mxu0 0.0
        %1331 = vmatpush.msra.mxu0 0.0
        %1332 = vmatpush.msra.mxu0 0.0
        %1333 = vmatpush.msra.mxu0 %v1316
        %1334 = vmatmul.f32.gmra.mxu0 %v1313
        %v1335 = vpop.f32.mrf.mxu0
        %v1336 = vadd.f32 0.0, %v1335
        %1337 = vdwg.mxu0
        %v1338 = vld [vmem:[%s8] sm:$0x1]
        %v1339 = vld [vmem:[#allocation7] sm:$0xff]
        %v1340 = vld [vmem:[#allocation7 + $0x8] sm:$0xff]
        %v1341 = vld [vmem:[#allocation7 + $0x10] sm:$0xff]
        %v1342 = vld [vmem:[#allocation7 + $0x18] sm:$0xff]
        %v1343 = vld [vmem:[#allocation7 + $0x20] sm:$0xff]
        %v1344 = vld [vmem:[#allocation7 + $0x28] sm:$0xff]
        %v1345 = vld [vmem:[#allocation7 + $0x30] sm:$0xff]
        %v1346 = vld [vmem:[#allocation7 + $0x38] sm:$0xff]
        %vm1347 = vcmask 523264
        %v1349 = vsel %vm1347, %v1336, 0
        %1351 = vmatpush.msra.mxu0 0.0
        %1352 = vmatpush.msra.mxu0 0.0
        %1353 = vmatpush.msra.mxu0 0.0
        %1354 = vmatpush.msra.mxu0 0.0
        %1355 = vmatpush.msra.mxu0 0.0
        %1356 = vmatpush.msra.mxu0 0.0
        %1357 = vmatpush.msra.mxu0 0.0
        %1358 = vmatpush.msra.mxu0 0.0
        %1359 = vmatpush.msra.mxu0 %v1346
        %1360 = vmatpush.msra.mxu0 %v1345
        %1361 = vmatpush.msra.mxu0 %v1344
        %1362 = vmatpush.msra.mxu0 %v1343
        %1363 = vmatpush.msra.mxu0 %v1342
        %1364 = vmatpush.msra.mxu0 %v1341
        %1365 = vmatpush.msra.mxu0 %v1340
        %1366 = vmatpush.msra.mxu0 %v1339
        %1367 = vmatmul.f32.gmra.mxu0 %v1349
        %v1368 = vpop.f32.mrf.mxu0
        %v1369 = vadd.f32 0.0, %v1368
        %1370 = vdwg.mxu0
        %v1371 = vadd.f32 %v1338, %v1369
        %s1372 = scalar_lea.vmem [#allocation7], 64
        %v1373 = vld [vmem:[%s1372] sm:$0xff]
        %v1374 = vld [vmem:[%s1372 + $0x8] sm:$0xff]
        %v1375 = vld [vmem:[%s1372 + $0x10] sm:$0xff]
        %v1376 = vld [vmem:[%s1372 + $0x18] sm:$0xff]
        %v1377 = vld [vmem:[%s1372 + $0x20] sm:$0xff]
        %v1378 = vld [vmem:[%s1372 + $0x28] sm:$0xff]
        %v1379 = vld [vmem:[%s1372 + $0x30] sm:$0xff]
        %v1380 = vld [vmem:[%s1372 + $0x38] sm:$0xff]
        %v1381 = vrot.slane %v1336, 1
        %v1382 = vsel %vm1347, %v1381, 0
        %1384 = vmatpush.msra.mxu0 0.0
        %1385 = vmatpush.msra.mxu0 0.0
        %1386 = vmatpush.msra.mxu0 0.0
        %1387 = vmatpush.msra.mxu0 0.0
        %1388 = vmatpush.msra.mxu0 0.0
        %1389 = vmatpush.msra.mxu0 0.0
        %1390 = vmatpush.msra.mxu0 0.0
        %1391 = vmatpush.msra.mxu0 0.0
        %1392 = vmatpush.msra.mxu0 %v1380
        %1393 = vmatpush.msra.mxu0 %v1379
        %1394 = vmatpush.msra.mxu0 %v1378
        %1395 = vmatpush.msra.mxu0 %v1377
        %1396 = vmatpush.msra.mxu0 %v1376
        %1397 = vmatpush.msra.mxu0 %v1375
        %1398 = vmatpush.msra.mxu0 %v1374
        %1399 = vmatpush.msra.mxu0 %v1373
        %1400 = vmatmul.f32.gmra.mxu0 %v1382
        %v1401 = vpop.f32.mrf.mxu0
        %v1402 = vadd.f32 0.0, %v1401
        %1403 = vdwg.mxu0
        %v1404 = vadd.f32 %v1371, %v1402
        %s1405 = scalar_lea.vmem [#allocation7], 128
        %v1406 = vld [vmem:[%s1405] sm:$0xff]
        %v1407 = vld [vmem:[%s1405 + $0x8] sm:$0xff]
        %v1408 = vld [vmem:[%s1405 + $0x10] sm:$0xff]
        %v1409 = vld [vmem:[%s1405 + $0x18] sm:$0xff]
        %v1410 = vld [vmem:[%s1405 + $0x20] sm:$0xff]
        %v1411 = vld [vmem:[%s1405 + $0x28] sm:$0xff]
        %v1412 = vld [vmem:[%s1405 + $0x30] sm:$0xff]
        %v1413 = vld [vmem:[%s1405 + $0x38] sm:$0xff]
        %v1414 = vrot.slane %v1336, 2
        %v1415 = vsel %vm1347, %v1414, 0
        %1417 = vmatpush.msra.mxu0 0.0
        %1418 = vmatpush.msra.mxu0 0.0
        %1419 = vmatpush.msra.mxu0 0.0
        %1420 = vmatpush.msra.mxu0 0.0
        %1421 = vmatpush.msra.mxu0 0.0
        %1422 = vmatpush.msra.mxu0 0.0
        %1423 = vmatpush.msra.mxu0 0.0
        %1424 = vmatpush.msra.mxu0 0.0
        %1425 = vmatpush.msra.mxu0 %v1413
        %1426 = vmatpush.msra.mxu0 %v1412
        %1427 = vmatpush.msra.mxu0 %v1411
        %1428 = vmatpush.msra.mxu0 %v1410
        %1429 = vmatpush.msra.mxu0 %v1409
        %1430 = vmatpush.msra.mxu0 %v1408
        %1431 = vmatpush.msra.mxu0 %v1407
        %1432 = vmatpush.msra.mxu0 %v1406
        %1433 = vmatmul.f32.gmra.mxu0 %v1415
        %v1434 = vpop.f32.mrf.mxu0
        %v1435 = vadd.f32 0.0, %v1434
        %1436 = vdwg.mxu0
        %v1437 = vadd.f32 %v1404, %v1435
        %s1438 = scalar_lea.vmem [#allocation7], 192
        %v1439 = vld [vmem:[%s1438] sm:$0xff]
        %v1440 = vld [vmem:[%s1438 + $0x8] sm:$0xff]
        %v1441 = vld [vmem:[%s1438 + $0x10] sm:$0xff]
        %v1442 = vld [vmem:[%s1438 + $0x18] sm:$0xff]
        %v1443 = vld [vmem:[%s1438 + $0x20] sm:$0xff]
        %v1444 = vld [vmem:[%s1438 + $0x28] sm:$0xff]
        %v1445 = vld [vmem:[%s1438 + $0x30] sm:$0xff]
        %v1446 = vld [vmem:[%s1438 + $0x38] sm:$0xff]
        %v1447 = vrot.slane %v1336, 3
        %v1448 = vsel %vm1347, %v1447, 0
        %1450 = vmatpush.msra.mxu0 0.0
        %1451 = vmatpush.msra.mxu0 0.0
        %1452 = vmatpush.msra.mxu0 0.0
        %1453 = vmatpush.msra.mxu0 0.0
        %1454 = vmatpush.msra.mxu0 0.0
        %1455 = vmatpush.msra.mxu0 0.0
        %1456 = vmatpush.msra.mxu0 0.0
        %1457 = vmatpush.msra.mxu0 0.0
        %1458 = vmatpush.msra.mxu0 %v1446
        %1459 = vmatpush.msra.mxu0 %v1445
        %1460 = vmatpush.msra.mxu0 %v1444
        %1461 = vmatpush.msra.mxu0 %v1443
        %1462 = vmatpush.msra.mxu0 %v1442
        %1463 = vmatpush.msra.mxu0 %v1441
        %1464 = vmatpush.msra.mxu0 %v1440
        %1465 = vmatpush.msra.mxu0 %v1439
        %1466 = vmatmul.f32.gmra.mxu0 %v1448
        %v1467 = vpop.f32.mrf.mxu0
        %v1468 = vadd.f32 0.0, %v1467
        %1469 = vdwg.mxu0
        %v1470 = vadd.f32 %v1437, %v1468
        %vm1471 = vcmp.ge.f32.partialorder %v1470, 0.0
        %1472 = vset.pattern.permute.xlu0 2
        %1473 = vperm.xlu0 %1472, %v1032
        %v1474 = vpop.permute.xlu0 %1473
        %v1476 = vperm.slane %v1474, 0
        %v1477 = vmul.f32 %v1476, %v1470
        %v1478 = vsel %vm1471, %v1470, %v1477
        %v1479 = vld [vmem:[%s9] sm:$0xff]
        %v1480 = vld [vmem:[%s9 + $0x8] sm:$0xff]
        %v1481 = vld [vmem:[%s9 + $0x10] sm:$0xff]
        %v1482 = vld [vmem:[%s9 + $0x18] sm:$0xff]
        %v1483 = vld [vmem:[%s9 + $0x20] sm:$0xff]
        %v1484 = vld [vmem:[%s9 + $0x28] sm:$0xff]
        %v1485 = vld [vmem:[%s9 + $0x30] sm:$0xff]
        %v1486 = vld [vmem:[%s9 + $0x38] sm:$0xff]
        %v1487 = vld [vmem:[%s9 + $0x40] sm:$0xff]
        %v1488 = vld [vmem:[%s9 + $0x48] sm:$0xff]
        %v1489 = vld [vmem:[%s9 + $0x50] sm:$0xff]
        %v1490 = vld [vmem:[%s9 + $0x58] sm:$0xff]
        %v1491 = vld [vmem:[%s9 + $0x60] sm:$0xff]
        %v1492 = vld [vmem:[%s9 + $0x68] sm:$0xff]
        %v1493 = vld [vmem:[%s9 + $0x70] sm:$0xff]
        %v1494 = vld [vmem:[%s9 + $0x78] sm:$0xff]
        %v1495 = vld [vmem:[%s10] sm:$0x1]
        %1496 = vmatpush.msra.mxu0 %v1494
        %1497 = vmatpush.msra.mxu0 %v1493
        %1498 = vmatpush.msra.mxu0 %v1492
        %1499 = vmatpush.msra.mxu0 %v1491
        %1500 = vmatpush.msra.mxu0 %v1490
        %1501 = vmatpush.msra.mxu0 %v1489
        %1502 = vmatpush.msra.mxu0 %v1488
        %1503 = vmatpush.msra.mxu0 %v1487
        %1504 = vmatpush.msra.mxu0 %v1486
        %1505 = vmatpush.msra.mxu0 %v1485
        %1506 = vmatpush.msra.mxu0 %v1484
        %1507 = vmatpush.msra.mxu0 %v1483
        %1508 = vmatpush.msra.mxu0 %v1482
        %1509 = vmatpush.msra.mxu0 %v1481
        %1510 = vmatpush.msra.mxu0 %v1480
        %1511 = vmatpush.msra.mxu0 %v1479
        %1512 = vmatmul.f32.gmra.mxu0 %v1478
        %v1513 = vpop.f32.mrf.mxu0
        %v1514 = vadd.f32 %v1495, %v1513
        %1515 = vdwg.mxu0
        %vm1516 = vcmp.ge.f32.partialorder %v1514, 0.0
        %1517 = vset.pattern.permute.xlu0 3
        %1518 = vperm.xlu0 %1517, %v1032
        %v1519 = vpop.permute.xlu0 %1518
        %v1521 = vperm.slane %v1519, 0
        %v1522 = vmul.f32 %v1521, %v1514
        %v1523 = vsel %vm1516, %v1514, %v1522
        %v1524 = vld [vmem:[%s11] sm:$0xff]
        %v1525 = vld [vmem:[%s11 + $0x8] sm:$0xff]
        %v1526 = vld [vmem:[%s11 + $0x10] sm:$0xff]
        %v1527 = vld [vmem:[%s11 + $0x18] sm:$0xff]
        %v1528 = vld [vmem:[%s11 + $0x20] sm:$0xff]
        %v1529 = vld [vmem:[%s11 + $0x28] sm:$0xff]
        %v1530 = vld [vmem:[%s11 + $0x30] sm:$0xff]
        %v1531 = vld [vmem:[%s11 + $0x38] sm:$0xff]
        %v1532 = vld [vmem:[%s11 + $0x40] sm:$0xff]
        %v1533 = vld [vmem:[%s11 + $0x48] sm:$0xff]
        %v1534 = vld [vmem:[%s11 + $0x50] sm:$0xff]
        %v1535 = vld [vmem:[%s11 + $0x58] sm:$0xff]
        %v1536 = vld [vmem:[%s11 + $0x60] sm:$0xff]
        %v1537 = vld [vmem:[%s11 + $0x68] sm:$0xff]
        %v1538 = vld [vmem:[%s11 + $0x70] sm:$0xff]
        %v1539 = vld [vmem:[%s11 + $0x78] sm:$0xff]
        %v1540 = vld [vmem:[%s12] sm:$0x1]
        %1541 = vmatpush.msra.mxu0 %v1539
        %1542 = vmatpush.msra.mxu0 %v1538
        %1543 = vmatpush.msra.mxu0 %v1537
        %1544 = vmatpush.msra.mxu0 %v1536
        %1545 = vmatpush.msra.mxu0 %v1535
        %1546 = vmatpush.msra.mxu0 %v1534
        %1547 = vmatpush.msra.mxu0 %v1533
        %1548 = vmatpush.msra.mxu0 %v1532
        %1549 = vmatpush.msra.mxu0 %v1531
        %1550 = vmatpush.msra.mxu0 %v1530
        %1551 = vmatpush.msra.mxu0 %v1529
        %1552 = vmatpush.msra.mxu0 %v1528
        %1553 = vmatpush.msra.mxu0 %v1527
        %1554 = vmatpush.msra.mxu0 %v1526
        %1555 = vmatpush.msra.mxu0 %v1525
        %1556 = vmatpush.msra.mxu0 %v1524
        %1557 = vmatmul.f32.gmra.mxu0 %v1523
        %v1558 = vpop.f32.mrf.mxu0
        %v1559 = vadd.f32 %v1540, %v1558
        %1560 = vdwg.mxu0
        %vm1561 = vcmp.ge.f32.partialorder %v1559, 0.0
        %1562 = vset.pattern.permute.xlu0 4
        %1563 = vperm.xlu0 %1562, %v1032
        %v1564 = vpop.permute.xlu0 %1563
        %v1566 = vperm.slane %v1564, 0
        %v1567 = vmul.f32 %v1566, %v1559
        %v1568 = vsel %vm1561, %v1559, %v1567
        %vm1569 = vcmask 8192
        %1570 = vst.msk [vmem:[%s594] sm:$0x1] %vm1569, %v1568
        %v1571 = vld [vmem:[%s13] sm:$0x1]
        %1573 = vset.pattern.permute.xlu0 0
        %1574 = vperm.xlu0 %1573, %v1568
        %v1575 = vpop.permute.xlu0 %1574
        %v1577 = vmul.f32 %v1575, %v1571
        %v1578 = vld [vmem:[%s13 + $0x1] sm:$0x1]
        %1579 = vset.pattern.permute.xlu0 1
        %1580 = vperm.xlu0 %1579, %v1568
        %v1581 = vpop.permute.xlu0 %1580
        %v1583 = vmul.f32 %v1581, %v1578
        %v1584 = vadd.f32 %v1577, %v1583
        %v1585 = vld [vmem:[%s14] sm:$0x1]
        %v1586 = vadd.f32 %v1584, %v1585
        %vm1587 = vcmask 73728
        %v1588 = vsel %vm1587, %v1586, -inf
        %1589 = vmax.xlane.f32.xlu0 %v1588
        %v1590 = vpop.xlane.xlu0 %1589
        %v1591 = vsub.f32 %v1586, %v1590
        %v1592 = vmul.f32 %v1591, 1.442695
        %v1593 = vpow.pop %v1592
        %v1594 = vsel %vm1587, %v1593, 0.0
        %1595 = vadd.xlane.f32.xlu0 %v1594
        %v1596 = vpop.xlane.xlu0 %1595
        %v1597 = vlog2.pop %v1596
        %v1598 = vmul.f32 %v1597, 0.6931472
        %v1599 = vadd.f32 %v1590, %v1598
        %v1600 = vsub.f32 %v1586, %v1599
        %1601 = vst.msk [vmem:[%s600] sm:$0x1] %vm1587, %v1600
        %s1602 = sand.u32 %s386, 1
        %s1603 = scalar_lea.sflag [#allocation4], %s1602
        %s1604 = sand.u32 %s386, 1
        %s1605 = scalar_lea.vmem [#allocation8], %s1604
        %s1606 = sand.u32 %s412, 1
        %s1607 = scalar_lea.sflag [#allocation10], %s1606
        %s1608 = sand.u32 %s412, 1
        %s1609 = scalar_lea.vmem [#allocation9], %s1608
        // Predicated region
        $region97: #{lenet_forward.1} parent=83 // pred_check
          %p1610 = pneg %p396
        $region98: #{lenet_forward.1} parent=83 // pred_check_branch
          %1612 = sbr.rel (%p1610) target = $region100
        $region99: #{lenet_forward.1} parent=83 // pred_region
          %1614 = vsyncadd %s1603, 0
          %s1615 = scalar_lea.hbm %s16, %s37
          %s1617 = sshll.u32 %s1605, 4
          %s1618 = int_to_ptr.vmem [resolvable:$true] %s1617
          %s1619 = sshll.u32 %s1615, 4
          %s1620 = int_to_ptr.hbm [resolvable:$true] %s1619
          %1622 = dma.vmem_to_hbm [thread:$0]  %s1618, 16, %s1620, %s1603
        $region100: #{lenet_forward.1} parent=83 // pred_fallthru
          _
        // Predicated region
        $region101: #{lenet_forward.1} parent=83 // pred_check
          %p1623 = pneg %p422
        $region102: #{lenet_forward.1} parent=83 // pred_check_branch
          %1625 = sbr.rel (%p1623) target = $region104
        $region103: #{lenet_forward.1} parent=83 // pred_region
          %1627 = vsyncadd %s1607, 0
          %s1628 = scalar_lea.hbm %s17, %s37
          %s1630 = sshll.u32 %s1609, 4
          %s1631 = int_to_ptr.vmem [resolvable:$true] %s1630
          %s1632 = sshll.u32 %s1628, 4
          %s1633 = int_to_ptr.hbm [resolvable:$true] %s1632
          %1635 = dma.vmem_to_hbm [thread:$0]  %s1631, 16, %s1633, %s1607
        $region104: #{lenet_forward.1} parent=83 // pred_fallthru
          _
      $region84: #{lenet_forward.1} parent=5 // pred_fallthru
        _
      %p1636 = scmp.le.s32.totalorder 2, %s32
      // Predicated region
      $region105: #{lenet_forward.1} parent=5 // pred_check
        %p1637 = pneg %p1636
      $region106: #{lenet_forward.1} parent=5 // pred_check_branch
        %1639 = sbr.rel (%p1637) target = $region108
      $region107: #{lenet_forward.1} parent=5 // pred_region
        %s1640 = ssub.s32 %s32, 2
        // Predicated region
        $region109: #{lenet_forward.1} parent=107 // pred_check
          %p1641 = pneg %p402
        $region110: #{lenet_forward.1} parent=107 // pred_check_branch
          %1643 = sbr.rel (%p1641) target = $region112
        $region111: #{lenet_forward.1} parent=107 // pred_region
          %s1644 = sand.u32 %s387, 1
          %s1645 = scalar_lea.sflag [#allocation4], %s1644
          %s1646 = sand.u32 %s387, 1
          %s1647 = scalar_lea.vmem [#allocation8], %s1646
          %1649 = dma.done %s1645, 16
        $region112: #{lenet_forward.1} parent=107 // pred_fallthru
          _
        // Predicated region
        $region113: #{lenet_forward.1} parent=107 // pred_check
          %p1650 = pneg %p428
        $region114: #{lenet_forward.1} parent=107 // pred_check_branch
          %1652 = sbr.rel (%p1650) target = $region116
        $region115: #{lenet_forward.1} parent=107 // pred_region
          %s1653 = sand.u32 %s413, 1
          %s1654 = scalar_lea.sflag [#allocation10], %s1653
          %s1655 = sand.u32 %s413, 1
          %s1656 = scalar_lea.vmem [#allocation9], %s1655
          %1658 = dma.done %s1654, 16
        $region116: #{lenet_forward.1} parent=107 // pred_fallthru
          _
      $region108: #{lenet_forward.1} parent=5 // pred_fallthru
        _
    $region6: #{lenet_forward.1} parent=1 // loop_footer
      %s36 = sadd.s32 1, %s32
    $region7: #{lenet_forward.1} parent=1 // loop_footer_branch
      %31 = sbr.rel target = $region3
    $region8: #{lenet_forward.1} parent=1 // loop_exit
      _
    %1659 = vsyncpa [#allocation3], 1
    %s1660 = scalar_lea.sflag [#allocation3], 1
    %1661 = vsyncpa %s1660, 1
    %1662 = vsyncpa [#allocation6], 1
    %1663 = vsyncpa [#allocation4], 1
    %s1664 = scalar_lea.sflag [#allocation4], 1
    %1665 = vsyncpa %s1664, 1
    %1666 = vsyncpa [#allocation10], 1
    %s1667 = scalar_lea.sflag [#allocation10], 1
    %1668 = vsyncpa %s1667, 1

</llo_original>
